<compile_context>
chip_gen: v5e
topology: v5e:2x2
jax: 0.10.0
libtpu: 0.0.40
codegen_flags: <defaults>
</compile_context>

<pallas_src>
import functools

import jax
import jax.numpy as jnp
from jax.experimental import pallas as pl
from jax.experimental.pallas import tpu as pltpu


def _sigmoid(x):
    # EUP-friendly form: avoids the VPU divide of 1/(1+exp(-x)).
    return 0.5 * (jnp.tanh(0.5 * x) + 1.0)


def _cell_update(gates, c_prev):
    """LSTM cell nonlinearity. gates: (B, 4H) f32, gate order i,f,g,o."""
    H = c_prev.shape[-1]
    i = _sigmoid(gates[:, 0 * H:1 * H])
    f = _sigmoid(gates[:, 1 * H:2 * H])
    g = jnp.tanh(gates[:, 2 * H:3 * H])
    o = _sigmoid(gates[:, 3 * H:4 * H])
    c = f * c_prev + i * g
    h = o * jnp.tanh(c)
    return h, c


def _bf16_dot(a_bf16, b_bf16):
    # bf16 MXU operands, f32 accumulation.
    return jnp.dot(a_bf16, b_bf16, preferred_element_type=jnp.float32)


def _mimic_lstm_kernel(
    x_ref,                                   # (T*B, I)  bf16, time-major rows
    wih_f_ref, wih_r_ref,                    # (I, 4Hh)  bf16
    whh_f_ref, whh_r_ref,                    # (Hh, 4Hh) bf16
    b_f_ref, b_r_ref,                        # (1, 4Hh)  f32 (b_ih + b_hh fused)
    w2_f_ref, w2_r_ref,                      # (Hh, 4D)  bf16 (split halves of W2_ih^T)
    w2_hh_ref,                               # (D, 4D)   bf16
    b2_ref,                                  # (1, 4D)   f32
    out_ref,                                 # (B, D)    final h2
    hf_buf, hb_buf,                          # VMEM (T*B, Hh) f32 scratch
    *, T, B,
):
    Hh = hf_buf.shape[-1]
    D = out_ref.shape[-1]

    x = x_ref[...]
    whh_f = whh_f_ref[...]
    whh_r = whh_r_ref[...]
    b_f = b_f_ref[...]
    b_r = b_r_ref[...]

    # Hoisted input projections: one MXU dot per direction covering all T steps.
    xproj_f = _bf16_dot(x, wih_f_ref[...])   # (T*B, 4Hh) f32
    xproj_r = _bf16_dot(x, wih_r_ref[...])   # (T*B, 4Hh) f32

    # ---- bi-LSTM, backward direction (walk time in reverse), fully unrolled ----
    h = jnp.zeros((B, Hh), jnp.float32)
    c = jnp.zeros((B, Hh), jnp.float32)
    for k in range(T):
        t = T - 1 - k
        gates = (xproj_r[t * B:(t + 1) * B, :]
                 + _bf16_dot(h.astype(jnp.bfloat16), whh_r)
                 + b_r)
        h, c = _cell_update(gates, c)
        hb_buf[pl.ds(t * B, B), :] = h       # stored at the real time index

    # ---- bi-LSTM, forward direction ----
    h = jnp.zeros((B, Hh), jnp.float32)
    c = jnp.zeros((B, Hh), jnp.float32)
    for t in range(T):
        gates = (xproj_f[t * B:(t + 1) * B, :]
                 + _bf16_dot(h.astype(jnp.bfloat16), whh_f)
                 + b_f)
        h, c = _cell_update(gates, c)
        hf_buf[pl.ds(t * B, B), :] = h

    # ---- hoisted LSTM2 input projection over all T steps (off the recurrence) ----
    proj2 = (_bf16_dot(hf_buf[...].astype(jnp.bfloat16), w2_f_ref[...])
             + _bf16_dot(hb_buf[...].astype(jnp.bfloat16), w2_r_ref[...])
             + b2_ref[...])                  # (T*B, 4D) f32

    # ---- second LSTM: exactly one recurrent MXU dot per step ----
    w2_hh = w2_hh_ref[...]
    h2 = jnp.zeros((B, D), jnp.float32)
    c2 = jnp.zeros((B, D), jnp.float32)
    for t in range(T):
        gates2 = (proj2[t * B:(t + 1) * B, :]
                  + _bf16_dot(h2.astype(jnp.bfloat16), w2_hh))
        h2, c2 = _cell_update(gates2, c2)

    out_ref[...] = h2.astype(out_ref.dtype)


def _prep_params(params):
    """Pre-transpose to [K, 4H], fuse biases, pre-cast weights to bf16."""
    bf16 = jnp.bfloat16
    Hh = params["w_hh_f"].shape[1]
    p = {
        "wih_f_t": params["w_ih_f"].T.astype(bf16),            # (I, 4Hh)
        "wih_r_t": params["w_ih_r"].T.astype(bf16),
        "whh_f_t": params["w_hh_f"].T.astype(bf16),            # (Hh, 4Hh)
        "whh_r_t": params["w_hh_r"].T.astype(bf16),
        "b_f": (params["b_ih_f"] + params["b_hh_f"])[None, :].astype(jnp.float32),
        "b_r": (params["b_ih_r"] + params["b_hh_r"])[None, :].astype(jnp.float32),
        "w2_hh_t": params["w_hh_2"].T.astype(bf16),             # (D, 4D)
        "b2": (params["b_ih_2"] + params["b_hh_2"])[None, :].astype(jnp.float32),
    }
    w2_ih_t = params["w_ih_2"].T.astype(bf16)                   # (D, 4D)
    p["w2_f"] = w2_ih_t[:Hh]                                    # fwd half of the concat
    p["w2_r"] = w2_ih_t[Hh:]                                    # bwd half
    return p


def mimic_lstm_forward(x, params):
    """x: [B, T, I] float32 (batch_first). Returns [B, dim] = final hidden state
    of the 2nd LSTM, matching MIMICIII_LSTM.forward (dropout=0 -> identity)."""
    B, T, I = x.shape
    Hh = params["w_hh_f"].shape[1]            # hidden_dim // 2
    D = 2 * Hh

    # Time-major flattened activations: row t*B + b is x[b, t, :]; pre-cast to
    # bf16 so the in-kernel input-projection dots need no per-call casts.
    x_flat = jnp.transpose(x, (1, 0, 2)).reshape(T * B, I).astype(jnp.bfloat16)
    pp = _prep_params(params)

    vmem = pl.BlockSpec(memory_space=pltpu.MemorySpace.VMEM)
    kernel = functools.partial(_mimic_lstm_kernel, T=T, B=B)

    return pl.pallas_call(
        kernel,
        out_shape=jax.ShapeDtypeStruct((B, D), x.dtype),
        in_specs=[vmem] * 11,
        out_specs=vmem,
        scratch_shapes=[
            pltpu.VMEM((T * B, Hh), jnp.float32),   # forward hidden states
            pltpu.VMEM((T * B, Hh), jnp.float32),   # backward hidden states
        ],
    )(x_flat, pp["wih_f_t"], pp["wih_r_t"], pp["whh_f_t"], pp["whh_r_t"],
      pp["b_f"], pp["b_r"], pp["w2_f"], pp["w2_r"], pp["w2_hh_t"], pp["b2"])


def ref_forward(x, params):
    """Pure-JAX reference with identical math (bf16 operands, f32 accum,
    tanh-form sigmoid, hoisted projections)."""
    B, T, I = x.shape
    Hh = params["w_hh_f"].shape[1]
    D = 2 * Hh
    bf16 = jnp.bfloat16
    pp = _prep_params(params)
    x_flat = jnp.transpose(x, (1, 0, 2)).reshape(T * B, I).astype(bf16)

    xproj_f = _bf16_dot(x_flat, pp["wih_f_t"])
    xproj_r = _bf16_dot(x_flat, pp["wih_r_t"])

    # backward direction
    h = jnp.zeros((B, Hh), jnp.float32)
    c = jnp.zeros((B, Hh), jnp.float32)
    hb = [None] * T
    for k in range(T):
        t = T - 1 - k
        gates = (xproj_r[t * B:(t + 1) * B, :]
                 + _bf16_dot(h.astype(bf16), pp["whh_r_t"]) + pp["b_r"])
        h, c = _cell_update(gates, c)
        hb[t] = h

    # forward direction
    h = jnp.zeros((B, Hh), jnp.float32)
    c = jnp.zeros((B, Hh), jnp.float32)
    hf = [None] * T
    for t in range(T):
        gates = (xproj_f[t * B:(t + 1) * B, :]
                 + _bf16_dot(h.astype(bf16), pp["whh_f_t"]) + pp["b_f"])
        h, c = _cell_update(gates, c)
        hf[t] = h

    hf_all = jnp.concatenate(hf, axis=0)
    hb_all = jnp.concatenate(hb, axis=0)
    proj2 = (_bf16_dot(hf_all.astype(bf16), pp["w2_f"])
             + _bf16_dot(hb_all.astype(bf16), pp["w2_r"]) + pp["b2"])

    h2 = jnp.zeros((B, D), jnp.float32)
    c2 = jnp.zeros((B, D), jnp.float32)
    for t in range(T):
        gates2 = (proj2[t * B:(t + 1) * B, :]
                  + _bf16_dot(h2.astype(bf16), pp["w2_hh_t"]))
        h2, c2 = _cell_update(gates2, c2)
    return h2


if __name__ == "__main__":
    key = jax.random.PRNGKey(0)
    B, T, I = 2, 8, 24        # batch, seq, input_dim
    D = 32                    # hidden_dim ("dim" in MIMICIII_LSTM)
    Hh = D // 2

    ks = jax.random.split(key, 13)
    s = 0.1
    params = {
        # bi-LSTM forward direction (PyTorch layout: [4H, K]), gate order i,f,g,o
        "w_ih_f": s * jax.random.normal(ks[0], (4 * Hh, I), jnp.float32),
        "w_hh_f": s * jax.random.normal(ks[1], (4 * Hh, Hh), jnp.float32),
        "b_ih_f": s * jax.random.normal(ks[2], (4 * Hh,), jnp.float32),
        "b_hh_f": s * jax.random.normal(ks[3], (4 * Hh,), jnp.float32),
        # bi-LSTM reverse direction
        "w_ih_r": s * jax.random.normal(ks[4], (4 * Hh, I), jnp.float32),
        "w_hh_r": s * jax.random.normal(ks[5], (4 * Hh, Hh), jnp.float32),
        "b_ih_r": s * jax.random.normal(ks[6], (4 * Hh,), jnp.float32),
        "b_hh_r": s * jax.random.normal(ks[7], (4 * Hh,), jnp.float32),
        # second (unidirectional) LSTM: input_size = D, hidden_size = D
        "w_ih_2": s * jax.random.normal(ks[8], (4 * D, D), jnp.float32),
        "w_hh_2": s * jax.random.normal(ks[9], (4 * D, D), jnp.float32),
        "b_ih_2": s * jax.random.normal(ks[10], (4 * D,), jnp.float32),
        "b_hh_2": s * jax.random.normal(ks[11], (4 * D,), jnp.float32),
    }
    x = jax.random.normal(ks[12], (B, T, I), jnp.float32)

    out = mimic_lstm_forward(x, params)
    out = jax.block_until_ready(out)

    ref = ref_forward(x, params)
    assert out.shape == (B, D)
    assert jnp.allclose(out, ref, atol=1e-3, rtol=1e-3), (
        "max abs diff = %g" % float(jnp.max(jnp.abs(out - ref))))
    print("KERNEL_OK")
</pallas_src>

<mosaic_0001>
module attributes {stable_mosaic.version = 11 : i64} {
  func.func @_mimic_lstm_kernel(%arg0: memref<16x24xbf16, #tpu.memory_space<vmem>>, %arg1: memref<24x64xbf16, #tpu.memory_space<vmem>>, %arg2: memref<24x64xbf16, #tpu.memory_space<vmem>>, %arg3: memref<16x64xbf16, #tpu.memory_space<vmem>>, %arg4: memref<16x64xbf16, #tpu.memory_space<vmem>>, %arg5: memref<1x64xf32, #tpu.memory_space<vmem>>, %arg6: memref<1x64xf32, #tpu.memory_space<vmem>>, %arg7: memref<16x128xbf16, #tpu.memory_space<vmem>>, %arg8: memref<16x128xbf16, #tpu.memory_space<vmem>>, %arg9: memref<32x128xbf16, #tpu.memory_space<vmem>>, %arg10: memref<1x128xf32, #tpu.memory_space<vmem>>, %arg11: memref<2x32xf32, #tpu.memory_space<vmem>>, %arg12: memref<16x16xf32, #tpu.memory_space<vmem>>, %arg13: memref<16x16xf32, #tpu.memory_space<vmem>>) attributes {dimension_semantics = [], scalar_prefetch = 0 : i64, scratch_operands = 2 : i64, tpu.core_type = #tpu.core_type<tc>} {
    %c0 = arith.constant 0 : index
    %c0_0 = arith.constant 0 : index
    %0 = vector.load %arg0[%c0, %c0_0] : memref<16x24xbf16, #tpu.memory_space<vmem>>, vector<16x24xbf16>
    %c0_1 = arith.constant 0 : index
    %c0_2 = arith.constant 0 : index
    %1 = vector.load %arg3[%c0_1, %c0_2] : memref<16x64xbf16, #tpu.memory_space<vmem>>, vector<16x64xbf16>
    %c0_3 = arith.constant 0 : index
    %c0_4 = arith.constant 0 : index
    %2 = vector.load %arg4[%c0_3, %c0_4] : memref<16x64xbf16, #tpu.memory_space<vmem>>, vector<16x64xbf16>
    %c0_5 = arith.constant 0 : index
    %c0_6 = arith.constant 0 : index
    %3 = vector.load %arg5[%c0_5, %c0_6] : memref<1x64xf32, #tpu.memory_space<vmem>>, vector<1x64xf32>
    %c0_7 = arith.constant 0 : index
    %c0_8 = arith.constant 0 : index
    %4 = vector.load %arg6[%c0_7, %c0_8] : memref<1x64xf32, #tpu.memory_space<vmem>>, vector<1x64xf32>
    %c0_9 = arith.constant 0 : index
    %c0_10 = arith.constant 0 : index
    %5 = vector.load %arg1[%c0_9, %c0_10] : memref<24x64xbf16, #tpu.memory_space<vmem>>, vector<24x64xbf16>
    %cst = arith.constant dense<0.000000e+00> : vector<16x64xf32>
    %6 = tpu.matmul %0, %5, %cst {dimension_numbers = #tpu.dot_dimension_numbers<[1], [0], [0], [1], [0, 0, 1, 1], [], []>} : vector<16x24xbf16>, vector<24x64xbf16>, vector<16x64xf32> -> vector<16x64xf32>
    %c0_11 = arith.constant 0 : index
    %c0_12 = arith.constant 0 : index
    %7 = vector.load %arg2[%c0_11, %c0_12] : memref<24x64xbf16, #tpu.memory_space<vmem>>, vector<24x64xbf16>
    %cst_13 = arith.constant dense<0.000000e+00> : vector<16x64xf32>
    %8 = tpu.matmul %0, %7, %cst_13 {dimension_numbers = #tpu.dot_dimension_numbers<[1], [0], [0], [1], [0, 0, 1, 1], [], []>} : vector<16x24xbf16>, vector<24x64xbf16>, vector<16x64xf32> -> vector<16x64xf32>
    %cst_14 = arith.constant 0.000000e+00 : f32
    %9 = vector.broadcast %cst_14 : f32 to vector<2x16xf32>
    %cst_15 = arith.constant 0.000000e+00 : f32
    %10 = vector.broadcast %cst_15 : f32 to vector<2x16xf32>
    %11 = vector.extract_strided_slice %8 {offsets = [14, 0], sizes = [2, 64], strides = [1, 1]} : vector<16x64xf32> to vector<2x64xf32>
    %12 = arith.truncf %9 : vector<2x16xf32> to vector<2x16xbf16>
    %cst_16 = arith.constant dense<0.000000e+00> : vector<2x64xf32>
    %13 = tpu.matmul %12, %2, %cst_16 {dimension_numbers = #tpu.dot_dimension_numbers<[1], [0], [0], [1], [0, 0, 1, 1], [], []>} : vector<2x16xbf16>, vector<16x64xbf16>, vector<2x64xf32> -> vector<2x64xf32>
    %14 = arith.addf %11, %13 : vector<2x64xf32>
    %15 = vector.broadcast %4 : vector<1x64xf32> to vector<2x64xf32>
    %16 = arith.addf %14, %15 : vector<2x64xf32>
    %17 = vector.extract_strided_slice %16 {offsets = [0, 0], sizes = [2, 16], strides = [1, 1]} : vector<2x64xf32> to vector<2x16xf32>
    %cst_17 = arith.constant 5.000000e-01 : f32
    %18 = vector.broadcast %cst_17 : f32 to vector<2x16xf32>
    %19 = arith.mulf %18, %17 : vector<2x16xf32>
    %20 = math.tanh %19 : vector<2x16xf32>
    %cst_18 = arith.constant 1.000000e+00 : f32
    %21 = vector.broadcast %cst_18 : f32 to vector<2x16xf32>
    %22 = arith.addf %20, %21 : vector<2x16xf32>
    %cst_19 = arith.constant 5.000000e-01 : f32
    %23 = vector.broadcast %cst_19 : f32 to vector<2x16xf32>
    %24 = arith.mulf %23, %22 : vector<2x16xf32>
    %25 = vector.extract_strided_slice %16 {offsets = [0, 16], sizes = [2, 16], strides = [1, 1]} : vector<2x64xf32> to vector<2x16xf32>
    %cst_20 = arith.constant 5.000000e-01 : f32
    %26 = vector.broadcast %cst_20 : f32 to vector<2x16xf32>
    %27 = arith.mulf %26, %25 : vector<2x16xf32>
    %28 = math.tanh %27 : vector<2x16xf32>
    %cst_21 = arith.constant 1.000000e+00 : f32
    %29 = vector.broadcast %cst_21 : f32 to vector<2x16xf32>
    %30 = arith.addf %28, %29 : vector<2x16xf32>
    %cst_22 = arith.constant 5.000000e-01 : f32
    %31 = vector.broadcast %cst_22 : f32 to vector<2x16xf32>
    %32 = arith.mulf %31, %30 : vector<2x16xf32>
    %33 = vector.extract_strided_slice %16 {offsets = [0, 32], sizes = [2, 16], strides = [1, 1]} : vector<2x64xf32> to vector<2x16xf32>
    %34 = math.tanh %33 : vector<2x16xf32>
    %35 = vector.extract_strided_slice %16 {offsets = [0, 48], sizes = [2, 16], strides = [1, 1]} : vector<2x64xf32> to vector<2x16xf32>
    %cst_23 = arith.constant 5.000000e-01 : f32
    %36 = vector.broadcast %cst_23 : f32 to vector<2x16xf32>
    %37 = arith.mulf %36, %35 : vector<2x16xf32>
    %38 = math.tanh %37 : vector<2x16xf32>
    %cst_24 = arith.constant 1.000000e+00 : f32
    %39 = vector.broadcast %cst_24 : f32 to vector<2x16xf32>
    %40 = arith.addf %38, %39 : vector<2x16xf32>
    %cst_25 = arith.constant 5.000000e-01 : f32
    %41 = vector.broadcast %cst_25 : f32 to vector<2x16xf32>
    %42 = arith.mulf %41, %40 : vector<2x16xf32>
    %43 = arith.mulf %32, %10 : vector<2x16xf32>
    %44 = arith.mulf %24, %34 : vector<2x16xf32>
    %45 = arith.addf %43, %44 : vector<2x16xf32>
    %46 = math.tanh %45 : vector<2x16xf32>
    %47 = arith.mulf %42, %46 : vector<2x16xf32>
    %c14 = arith.constant 14 : index
    %c0_26 = arith.constant 0 : index
    %48 = vector.load %arg13[%c14, %c0_26] : memref<16x16xf32, #tpu.memory_space<vmem>>, vector<2x16xf32>
    tpu.vector_store %arg13[%c14, %c0_26], %47 {strides = array<i32>} : memref<16x16xf32, #tpu.memory_space<vmem>>, vector<2x16xf32>,
    %49 = vector.extract_strided_slice %8 {offsets = [12, 0], sizes = [2, 64], strides = [1, 1]} : vector<16x64xf32> to vector<2x64xf32>
    %50 = arith.truncf %47 : vector<2x16xf32> to vector<2x16xbf16>
    %cst_27 = arith.constant dense<0.000000e+00> : vector<2x64xf32>
    %51 = tpu.matmul %50, %2, %cst_27 {dimension_numbers = #tpu.dot_dimension_numbers<[1], [0], [0], [1], [0, 0, 1, 1], [], []>} : vector<2x16xbf16>, vector<16x64xbf16>, vector<2x64xf32> -> vector<2x64xf32>
    %52 = arith.addf %49, %51 : vector<2x64xf32>
    %53 = vector.broadcast %4 : vector<1x64xf32> to vector<2x64xf32>
    %54 = arith.addf %52, %53 : vector<2x64xf32>
    %55 = vector.extract_strided_slice %54 {offsets = [0, 0], sizes = [2, 16], strides = [1, 1]} : vector<2x64xf32> to vector<2x16xf32>
    %cst_28 = arith.constant 5.000000e-01 : f32
    %56 = vector.broadcast %cst_28 : f32 to vector<2x16xf32>
    %57 = arith.mulf %56, %55 : vector<2x16xf32>
    %58 = math.tanh %57 : vector<2x16xf32>
    %cst_29 = arith.constant 1.000000e+00 : f32
    %59 = vector.broadcast %cst_29 : f32 to vector<2x16xf32>
    %60 = arith.addf %58, %59 : vector<2x16xf32>
    %cst_30 = arith.constant 5.000000e-01 : f32
    %61 = vector.broadcast %cst_30 : f32 to vector<2x16xf32>
    %62 = arith.mulf %61, %60 : vector<2x16xf32>
    %63 = vector.extract_strided_slice %54 {offsets = [0, 16], sizes = [2, 16], strides = [1, 1]} : vector<2x64xf32> to vector<2x16xf32>
    %cst_31 = arith.constant 5.000000e-01 : f32
    %64 = vector.broadcast %cst_31 : f32 to vector<2x16xf32>
    %65 = arith.mulf %64, %63 : vector<2x16xf32>
    %66 = math.tanh %65 : vector<2x16xf32>
    %cst_32 = arith.constant 1.000000e+00 : f32
    %67 = vector.broadcast %cst_32 : f32 to vector<2x16xf32>
    %68 = arith.addf %66, %67 : vector<2x16xf32>
    %cst_33 = arith.constant 5.000000e-01 : f32
    %69 = vector.broadcast %cst_33 : f32 to vector<2x16xf32>
    %70 = arith.mulf %69, %68 : vector<2x16xf32>
    %71 = vector.extract_strided_slice %54 {offsets = [0, 32], sizes = [2, 16], strides = [1, 1]} : vector<2x64xf32> to vector<2x16xf32>
    %72 = math.tanh %71 : vector<2x16xf32>
    %73 = vector.extract_strided_slice %54 {offsets = [0, 48], sizes = [2, 16], strides = [1, 1]} : vector<2x64xf32> to vector<2x16xf32>
    %cst_34 = arith.constant 5.000000e-01 : f32
    %74 = vector.broadcast %cst_34 : f32 to vector<2x16xf32>
    %75 = arith.mulf %74, %73 : vector<2x16xf32>
    %76 = math.tanh %75 : vector<2x16xf32>
    %cst_35 = arith.constant 1.000000e+00 : f32
    %77 = vector.broadcast %cst_35 : f32 to vector<2x16xf32>
    %78 = arith.addf %76, %77 : vector<2x16xf32>
    %cst_36 = arith.constant 5.000000e-01 : f32
    %79 = vector.broadcast %cst_36 : f32 to vector<2x16xf32>
    %80 = arith.mulf %79, %78 : vector<2x16xf32>
    %81 = arith.mulf %70, %45 : vector<2x16xf32>
    %82 = arith.mulf %62, %72 : vector<2x16xf32>
    %83 = arith.addf %81, %82 : vector<2x16xf32>
    %84 = math.tanh %83 : vector<2x16xf32>
    %85 = arith.mulf %80, %84 : vector<2x16xf32>
    %c12 = arith.constant 12 : index
    %c0_37 = arith.constant 0 : index
    %86 = vector.load %arg13[%c12, %c0_37] : memref<16x16xf32, #tpu.memory_space<vmem>>, vector<2x16xf32>
    tpu.vector_store %arg13[%c12, %c0_37], %85 {strides = array<i32>} : memref<16x16xf32, #tpu.memory_space<vmem>>, vector<2x16xf32>,
    %87 = vector.extract_strided_slice %8 {offsets = [10, 0], sizes = [2, 64], strides = [1, 1]} : vector<16x64xf32> to vector<2x64xf32>
    %88 = arith.truncf %85 : vector<2x16xf32> to vector<2x16xbf16>
    %cst_38 = arith.constant dense<0.000000e+00> : vector<2x64xf32>
    %89 = tpu.matmul %88, %2, %cst_38 {dimension_numbers = #tpu.dot_dimension_numbers<[1], [0], [0], [1], [0, 0, 1, 1], [], []>} : vector<2x16xbf16>, vector<16x64xbf16>, vector<2x64xf32> -> vector<2x64xf32>
    %90 = arith.addf %87, %89 : vector<2x64xf32>
    %91 = vector.broadcast %4 : vector<1x64xf32> to vector<2x64xf32>
    %92 = arith.addf %90, %91 : vector<2x64xf32>
    %93 = vector.extract_strided_slice %92 {offsets = [0, 0], sizes = [2, 16], strides = [1, 1]} : vector<2x64xf32> to vector<2x16xf32>
    %cst_39 = arith.constant 5.000000e-01 : f32
    %94 = vector.broadcast %cst_39 : f32 to vector<2x16xf32>
    %95 = arith.mulf %94, %93 : vector<2x16xf32>
    %96 = math.tanh %95 : vector<2x16xf32>
    %cst_40 = arith.constant 1.000000e+00 : f32
    %97 = vector.broadcast %cst_40 : f32 to vector<2x16xf32>
    %98 = arith.addf %96, %97 : vector<2x16xf32>
    %cst_41 = arith.constant 5.000000e-01 : f32
    %99 = vector.broadcast %cst_41 : f32 to vector<2x16xf32>
    %100 = arith.mulf %99, %98 : vector<2x16xf32>
    %101 = vector.extract_strided_slice %92 {offsets = [0, 16], sizes = [2, 16], strides = [1, 1]} : vector<2x64xf32> to vector<2x16xf32>
    %cst_42 = arith.constant 5.000000e-01 : f32
    %102 = vector.broadcast %cst_42 : f32 to vector<2x16xf32>
    %103 = arith.mulf %102, %101 : vector<2x16xf32>
    %104 = math.tanh %103 : vector<2x16xf32>
    %cst_43 = arith.constant 1.000000e+00 : f32
    %105 = vector.broadcast %cst_43 : f32 to vector<2x16xf32>
    %106 = arith.addf %104, %105 : vector<2x16xf32>
    %cst_44 = arith.constant 5.000000e-01 : f32
    %107 = vector.broadcast %cst_44 : f32 to vector<2x16xf32>
    %108 = arith.mulf %107, %106 : vector<2x16xf32>
    %109 = vector.extract_strided_slice %92 {offsets = [0, 32], sizes = [2, 16], strides = [1, 1]} : vector<2x64xf32> to vector<2x16xf32>
    %110 = math.tanh %109 : vector<2x16xf32>
    %111 = vector.extract_strided_slice %92 {offsets = [0, 48], sizes = [2, 16], strides = [1, 1]} : vector<2x64xf32> to vector<2x16xf32>
    %cst_45 = arith.constant 5.000000e-01 : f32
    %112 = vector.broadcast %cst_45 : f32 to vector<2x16xf32>
    %113 = arith.mulf %112, %111 : vector<2x16xf32>
    %114 = math.tanh %113 : vector<2x16xf32>
    %cst_46 = arith.constant 1.000000e+00 : f32
    %115 = vector.broadcast %cst_46 : f32 to vector<2x16xf32>
    %116 = arith.addf %114, %115 : vector<2x16xf32>
    %cst_47 = arith.constant 5.000000e-01 : f32
    %117 = vector.broadcast %cst_47 : f32 to vector<2x16xf32>
    %118 = arith.mulf %117, %116 : vector<2x16xf32>
    %119 = arith.mulf %108, %83 : vector<2x16xf32>
    %120 = arith.mulf %100, %110 : vector<2x16xf32>
    %121 = arith.addf %119, %120 : vector<2x16xf32>
    %122 = math.tanh %121 : vector<2x16xf32>
    %123 = arith.mulf %118, %122 : vector<2x16xf32>
    %c10 = arith.constant 10 : index
    %c0_48 = arith.constant 0 : index
    %124 = vector.load %arg13[%c10, %c0_48] : memref<16x16xf32, #tpu.memory_space<vmem>>, vector<2x16xf32>
    tpu.vector_store %arg13[%c10, %c0_48], %123 {strides = array<i32>} : memref<16x16xf32, #tpu.memory_space<vmem>>, vector<2x16xf32>,
    %125 = vector.extract_strided_slice %8 {offsets = [8, 0], sizes = [2, 64], strides = [1, 1]} : vector<16x64xf32> to vector<2x64xf32>
    %126 = arith.truncf %123 : vector<2x16xf32> to vector<2x16xbf16>
    %cst_49 = arith.constant dense<0.000000e+00> : vector<2x64xf32>
    %127 = tpu.matmul %126, %2, %cst_49 {dimension_numbers = #tpu.dot_dimension_numbers<[1], [0], [0], [1], [0, 0, 1, 1], [], []>} : vector<2x16xbf16>, vector<16x64xbf16>, vector<2x64xf32> -> vector<2x64xf32>
    %128 = arith.addf %125, %127 : vector<2x64xf32>
    %129 = vector.broadcast %4 : vector<1x64xf32> to vector<2x64xf32>
    %130 = arith.addf %128, %129 : vector<2x64xf32>
    %131 = vector.extract_strided_slice %130 {offsets = [0, 0], sizes = [2, 16], strides = [1, 1]} : vector<2x64xf32> to vector<2x16xf32>
    %cst_50 = arith.constant 5.000000e-01 : f32
    %132 = vector.broadcast %cst_50 : f32 to vector<2x16xf32>
    %133 = arith.mulf %132, %131 : vector<2x16xf32>
    %134 = math.tanh %133 : vector<2x16xf32>
    %cst_51 = arith.constant 1.000000e+00 : f32
    %135 = vector.broadcast %cst_51 : f32 to vector<2x16xf32>
    %136 = arith.addf %134, %135 : vector<2x16xf32>
    %cst_52 = arith.constant 5.000000e-01 : f32
    %137 = vector.broadcast %cst_52 : f32 to vector<2x16xf32>
    %138 = arith.mulf %137, %136 : vector<2x16xf32>
    %139 = vector.extract_strided_slice %130 {offsets = [0, 16], sizes = [2, 16], strides = [1, 1]} : vector<2x64xf32> to vector<2x16xf32>
    %cst_53 = arith.constant 5.000000e-01 : f32
    %140 = vector.broadcast %cst_53 : f32 to vector<2x16xf32>
    %141 = arith.mulf %140, %139 : vector<2x16xf32>
    %142 = math.tanh %141 : vector<2x16xf32>
    %cst_54 = arith.constant 1.000000e+00 : f32
    %143 = vector.broadcast %cst_54 : f32 to vector<2x16xf32>
    %144 = arith.addf %142, %143 : vector<2x16xf32>
    %cst_55 = arith.constant 5.000000e-01 : f32
    %145 = vector.broadcast %cst_55 : f32 to vector<2x16xf32>
    %146 = arith.mulf %145, %144 : vector<2x16xf32>
    %147 = vector.extract_strided_slice %130 {offsets = [0, 32], sizes = [2, 16], strides = [1, 1]} : vector<2x64xf32> to vector<2x16xf32>
    %148 = math.tanh %147 : vector<2x16xf32>
    %149 = vector.extract_strided_slice %130 {offsets = [0, 48], sizes = [2, 16], strides = [1, 1]} : vector<2x64xf32> to vector<2x16xf32>
    %cst_56 = arith.constant 5.000000e-01 : f32
    %150 = vector.broadcast %cst_56 : f32 to vector<2x16xf32>
    %151 = arith.mulf %150, %149 : vector<2x16xf32>
    %152 = math.tanh %151 : vector<2x16xf32>
    %cst_57 = arith.constant 1.000000e+00 : f32
    %153 = vector.broadcast %cst_57 : f32 to vector<2x16xf32>
    %154 = arith.addf %152, %153 : vector<2x16xf32>
    %cst_58 = arith.constant 5.000000e-01 : f32
    %155 = vector.broadcast %cst_58 : f32 to vector<2x16xf32>
    %156 = arith.mulf %155, %154 : vector<2x16xf32>
    %157 = arith.mulf %146, %121 : vector<2x16xf32>
    %158 = arith.mulf %138, %148 : vector<2x16xf32>
    %159 = arith.addf %157, %158 : vector<2x16xf32>
    %160 = math.tanh %159 : vector<2x16xf32>
    %161 = arith.mulf %156, %160 : vector<2x16xf32>
    %c8 = arith.constant 8 : index
    %c0_59 = arith.constant 0 : index
    %162 = vector.load %arg13[%c8, %c0_59] : memref<16x16xf32, #tpu.memory_space<vmem>>, vector<2x16xf32>
    tpu.vector_store %arg13[%c8, %c0_59], %161 {strides = array<i32>} : memref<16x16xf32, #tpu.memory_space<vmem>>, vector<2x16xf32>,
    %163 = vector.extract_strided_slice %8 {offsets = [6, 0], sizes = [2, 64], strides = [1, 1]} : vector<16x64xf32> to vector<2x64xf32>
    %164 = arith.truncf %161 : vector<2x16xf32> to vector<2x16xbf16>
    %cst_60 = arith.constant dense<0.000000e+00> : vector<2x64xf32>
    %165 = tpu.matmul %164, %2, %cst_60 {dimension_numbers = #tpu.dot_dimension_numbers<[1], [0], [0], [1], [0, 0, 1, 1], [], []>} : vector<2x16xbf16>, vector<16x64xbf16>, vector<2x64xf32> -> vector<2x64xf32>
    %166 = arith.addf %163, %165 : vector<2x64xf32>
    %167 = vector.broadcast %4 : vector<1x64xf32> to vector<2x64xf32>
    %168 = arith.addf %166, %167 : vector<2x64xf32>
    %169 = vector.extract_strided_slice %168 {offsets = [0, 0], sizes = [2, 16], strides = [1, 1]} : vector<2x64xf32> to vector<2x16xf32>
    %cst_61 = arith.constant 5.000000e-01 : f32
    %170 = vector.broadcast %cst_61 : f32 to vector<2x16xf32>
    %171 = arith.mulf %170, %169 : vector<2x16xf32>
    %172 = math.tanh %171 : vector<2x16xf32>
    %cst_62 = arith.constant 1.000000e+00 : f32
    %173 = vector.broadcast %cst_62 : f32 to vector<2x16xf32>
    %174 = arith.addf %172, %173 : vector<2x16xf32>
    %cst_63 = arith.constant 5.000000e-01 : f32
    %175 = vector.broadcast %cst_63 : f32 to vector<2x16xf32>
    %176 = arith.mulf %175, %174 : vector<2x16xf32>
    %177 = vector.extract_strided_slice %168 {offsets = [0, 16], sizes = [2, 16], strides = [1, 1]} : vector<2x64xf32> to vector<2x16xf32>
    %cst_64 = arith.constant 5.000000e-01 : f32
    %178 = vector.broadcast %cst_64 : f32 to vector<2x16xf32>
    %179 = arith.mulf %178, %177 : vector<2x16xf32>
    %180 = math.tanh %179 : vector<2x16xf32>
    %cst_65 = arith.constant 1.000000e+00 : f32
    %181 = vector.broadcast %cst_65 : f32 to vector<2x16xf32>
    %182 = arith.addf %180, %181 : vector<2x16xf32>
    %cst_66 = arith.constant 5.000000e-01 : f32
    %183 = vector.broadcast %cst_66 : f32 to vector<2x16xf32>
    %184 = arith.mulf %183, %182 : vector<2x16xf32>
    %185 = vector.extract_strided_slice %168 {offsets = [0, 32], sizes = [2, 16], strides = [1, 1]} : vector<2x64xf32> to vector<2x16xf32>
    %186 = math.tanh %185 : vector<2x16xf32>
    %187 = vector.extract_strided_slice %168 {offsets = [0, 48], sizes = [2, 16], strides = [1, 1]} : vector<2x64xf32> to vector<2x16xf32>
    %cst_67 = arith.constant 5.000000e-01 : f32
    %188 = vector.broadcast %cst_67 : f32 to vector<2x16xf32>
    %189 = arith.mulf %188, %187 : vector<2x16xf32>
    %190 = math.tanh %189 : vector<2x16xf32>
    %cst_68 = arith.constant 1.000000e+00 : f32
    %191 = vector.broadcast %cst_68 : f32 to vector<2x16xf32>
    %192 = arith.addf %190, %191 : vector<2x16xf32>
    %cst_69 = arith.constant 5.000000e-01 : f32
    %193 = vector.broadcast %cst_69 : f32 to vector<2x16xf32>
    %194 = arith.mulf %193, %192 : vector<2x16xf32>
    %195 = arith.mulf %184, %159 : vector<2x16xf32>
    %196 = arith.mulf %176, %186 : vector<2x16xf32>
    %197 = arith.addf %195, %196 : vector<2x16xf32>
    %198 = math.tanh %197 : vector<2x16xf32>
    %199 = arith.mulf %194, %198 : vector<2x16xf32>
    %c6 = arith.constant 6 : index
    %c0_70 = arith.constant 0 : index
    %200 = vector.load %arg13[%c6, %c0_70] : memref<16x16xf32, #tpu.memory_space<vmem>>, vector<2x16xf32>
    tpu.vector_store %arg13[%c6, %c0_70], %199 {strides = array<i32>} : memref<16x16xf32, #tpu.memory_space<vmem>>, vector<2x16xf32>,
    %201 = vector.extract_strided_slice %8 {offsets = [4, 0], sizes = [2, 64], strides = [1, 1]} : vector<16x64xf32> to vector<2x64xf32>
    %202 = arith.truncf %199 : vector<2x16xf32> to vector<2x16xbf16>
    %cst_71 = arith.constant dense<0.000000e+00> : vector<2x64xf32>
    %203 = tpu.matmul %202, %2, %cst_71 {dimension_numbers = #tpu.dot_dimension_numbers<[1], [0], [0], [1], [0, 0, 1, 1], [], []>} : vector<2x16xbf16>, vector<16x64xbf16>, vector<2x64xf32> -> vector<2x64xf32>
    %204 = arith.addf %201, %203 : vector<2x64xf32>
    %205 = vector.broadcast %4 : vector<1x64xf32> to vector<2x64xf32>
    %206 = arith.addf %204, %205 : vector<2x64xf32>
    %207 = vector.extract_strided_slice %206 {offsets = [0, 0], sizes = [2, 16], strides = [1, 1]} : vector<2x64xf32> to vector<2x16xf32>
    %cst_72 = arith.constant 5.000000e-01 : f32
    %208 = vector.broadcast %cst_72 : f32 to vector<2x16xf32>
    %209 = arith.mulf %208, %207 : vector<2x16xf32>
    %210 = math.tanh %209 : vector<2x16xf32>
    %cst_73 = arith.constant 1.000000e+00 : f32
    %211 = vector.broadcast %cst_73 : f32 to vector<2x16xf32>
    %212 = arith.addf %210, %211 : vector<2x16xf32>
    %cst_74 = arith.constant 5.000000e-01 : f32
    %213 = vector.broadcast %cst_74 : f32 to vector<2x16xf32>
    %214 = arith.mulf %213, %212 : vector<2x16xf32>
    %215 = vector.extract_strided_slice %206 {offsets = [0, 16], sizes = [2, 16], strides = [1, 1]} : vector<2x64xf32> to vector<2x16xf32>
    %cst_75 = arith.constant 5.000000e-01 : f32
    %216 = vector.broadcast %cst_75 : f32 to vector<2x16xf32>
    %217 = arith.mulf %216, %215 : vector<2x16xf32>
    %218 = math.tanh %217 : vector<2x16xf32>
    %cst_76 = arith.constant 1.000000e+00 : f32
    %219 = vector.broadcast %cst_76 : f32 to vector<2x16xf32>
    %220 = arith.addf %218, %219 : vector<2x16xf32>
    %cst_77 = arith.constant 5.000000e-01 : f32
    %221 = vector.broadcast %cst_77 : f32 to vector<2x16xf32>
    %222 = arith.mulf %221, %220 : vector<2x16xf32>
    %223 = vector.extract_strided_slice %206 {offsets = [0, 32], sizes = [2, 16], strides = [1, 1]} : vector<2x64xf32> to vector<2x16xf32>
    %224 = math.tanh %223 : vector<2x16xf32>
    %225 = vector.extract_strided_slice %206 {offsets = [0, 48], sizes = [2, 16], strides = [1, 1]} : vector<2x64xf32> to vector<2x16xf32>
    %cst_78 = arith.constant 5.000000e-01 : f32
    %226 = vector.broadcast %cst_78 : f32 to vector<2x16xf32>
    %227 = arith.mulf %226, %225 : vector<2x16xf32>
    %228 = math.tanh %227 : vector<2x16xf32>
    %cst_79 = arith.constant 1.000000e+00 : f32
    %229 = vector.broadcast %cst_79 : f32 to vector<2x16xf32>
    %230 = arith.addf %228, %229 : vector<2x16xf32>
    %cst_80 = arith.constant 5.000000e-01 : f32
    %231 = vector.broadcast %cst_80 : f32 to vector<2x16xf32>
    %232 = arith.mulf %231, %230 : vector<2x16xf32>
    %233 = arith.mulf %222, %197 : vector<2x16xf32>
    %234 = arith.mulf %214, %224 : vector<2x16xf32>
    %235 = arith.addf %233, %234 : vector<2x16xf32>
    %236 = math.tanh %235 : vector<2x16xf32>
    %237 = arith.mulf %232, %236 : vector<2x16xf32>
    %c4 = arith.constant 4 : index
    %c0_81 = arith.constant 0 : index
    %238 = vector.load %arg13[%c4, %c0_81] : memref<16x16xf32, #tpu.memory_space<vmem>>, vector<2x16xf32>
    tpu.vector_store %arg13[%c4, %c0_81], %237 {strides = array<i32>} : memref<16x16xf32, #tpu.memory_space<vmem>>, vector<2x16xf32>,
    %239 = vector.extract_strided_slice %8 {offsets = [2, 0], sizes = [2, 64], strides = [1, 1]} : vector<16x64xf32> to vector<2x64xf32>
    %240 = arith.truncf %237 : vector<2x16xf32> to vector<2x16xbf16>
    %cst_82 = arith.constant dense<0.000000e+00> : vector<2x64xf32>
    %241 = tpu.matmul %240, %2, %cst_82 {dimension_numbers = #tpu.dot_dimension_numbers<[1], [0], [0], [1], [0, 0, 1, 1], [], []>} : vector<2x16xbf16>, vector<16x64xbf16>, vector<2x64xf32> -> vector<2x64xf32>
    %242 = arith.addf %239, %241 : vector<2x64xf32>
    %243 = vector.broadcast %4 : vector<1x64xf32> to vector<2x64xf32>
    %244 = arith.addf %242, %243 : vector<2x64xf32>
    %245 = vector.extract_strided_slice %244 {offsets = [0, 0], sizes = [2, 16], strides = [1, 1]} : vector<2x64xf32> to vector<2x16xf32>
    %cst_83 = arith.constant 5.000000e-01 : f32
    %246 = vector.broadcast %cst_83 : f32 to vector<2x16xf32>
    %247 = arith.mulf %246, %245 : vector<2x16xf32>
    %248 = math.tanh %247 : vector<2x16xf32>
    %cst_84 = arith.constant 1.000000e+00 : f32
    %249 = vector.broadcast %cst_84 : f32 to vector<2x16xf32>
    %250 = arith.addf %248, %249 : vector<2x16xf32>
    %cst_85 = arith.constant 5.000000e-01 : f32
    %251 = vector.broadcast %cst_85 : f32 to vector<2x16xf32>
    %252 = arith.mulf %251, %250 : vector<2x16xf32>
    %253 = vector.extract_strided_slice %244 {offsets = [0, 16], sizes = [2, 16], strides = [1, 1]} : vector<2x64xf32> to vector<2x16xf32>
    %cst_86 = arith.constant 5.000000e-01 : f32
    %254 = vector.broadcast %cst_86 : f32 to vector<2x16xf32>
    %255 = arith.mulf %254, %253 : vector<2x16xf32>
    %256 = math.tanh %255 : vector<2x16xf32>
    %cst_87 = arith.constant 1.000000e+00 : f32
    %257 = vector.broadcast %cst_87 : f32 to vector<2x16xf32>
    %258 = arith.addf %256, %257 : vector<2x16xf32>
    %cst_88 = arith.constant 5.000000e-01 : f32
    %259 = vector.broadcast %cst_88 : f32 to vector<2x16xf32>
    %260 = arith.mulf %259, %258 : vector<2x16xf32>
    %261 = vector.extract_strided_slice %244 {offsets = [0, 32], sizes = [2, 16], strides = [1, 1]} : vector<2x64xf32> to vector<2x16xf32>
    %262 = math.tanh %261 : vector<2x16xf32>
    %263 = vector.extract_strided_slice %244 {offsets = [0, 48], sizes = [2, 16], strides = [1, 1]} : vector<2x64xf32> to vector<2x16xf32>
    %cst_89 = arith.constant 5.000000e-01 : f32
    %264 = vector.broadcast %cst_89 : f32 to vector<2x16xf32>
    %265 = arith.mulf %264, %263 : vector<2x16xf32>
    %266 = math.tanh %265 : vector<2x16xf32>
    %cst_90 = arith.constant 1.000000e+00 : f32
    %267 = vector.broadcast %cst_90 : f32 to vector<2x16xf32>
    %268 = arith.addf %266, %267 : vector<2x16xf32>
    %cst_91 = arith.constant 5.000000e-01 : f32
    %269 = vector.broadcast %cst_91 : f32 to vector<2x16xf32>
    %270 = arith.mulf %269, %268 : vector<2x16xf32>
    %271 = arith.mulf %260, %235 : vector<2x16xf32>
    %272 = arith.mulf %252, %262 : vector<2x16xf32>
    %273 = arith.addf %271, %272 : vector<2x16xf32>
    %274 = math.tanh %273 : vector<2x16xf32>
    %275 = arith.mulf %270, %274 : vector<2x16xf32>
    %c2 = arith.constant 2 : index
    %c0_92 = arith.constant 0 : index
    %276 = vector.load %arg13[%c2, %c0_92] : memref<16x16xf32, #tpu.memory_space<vmem>>, vector<2x16xf32>
    tpu.vector_store %arg13[%c2, %c0_92], %275 {strides = array<i32>} : memref<16x16xf32, #tpu.memory_space<vmem>>, vector<2x16xf32>,
    %277 = vector.extract_strided_slice %8 {offsets = [0, 0], sizes = [2, 64], strides = [1, 1]} : vector<16x64xf32> to vector<2x64xf32>
    %278 = arith.truncf %275 : vector<2x16xf32> to vector<2x16xbf16>
    %cst_93 = arith.constant dense<0.000000e+00> : vector<2x64xf32>
    %279 = tpu.matmul %278, %2, %cst_93 {dimension_numbers = #tpu.dot_dimension_numbers<[1], [0], [0], [1], [0, 0, 1, 1], [], []>} : vector<2x16xbf16>, vector<16x64xbf16>, vector<2x64xf32> -> vector<2x64xf32>
    %280 = arith.addf %277, %279 : vector<2x64xf32>
    %281 = vector.broadcast %4 : vector<1x64xf32> to vector<2x64xf32>
    %282 = arith.addf %280, %281 : vector<2x64xf32>
    %283 = vector.extract_strided_slice %282 {offsets = [0, 0], sizes = [2, 16], strides = [1, 1]} : vector<2x64xf32> to vector<2x16xf32>
    %cst_94 = arith.constant 5.000000e-01 : f32
    %284 = vector.broadcast %cst_94 : f32 to vector<2x16xf32>
    %285 = arith.mulf %284, %283 : vector<2x16xf32>
    %286 = math.tanh %285 : vector<2x16xf32>
    %cst_95 = arith.constant 1.000000e+00 : f32
    %287 = vector.broadcast %cst_95 : f32 to vector<2x16xf32>
    %288 = arith.addf %286, %287 : vector<2x16xf32>
    %cst_96 = arith.constant 5.000000e-01 : f32
    %289 = vector.broadcast %cst_96 : f32 to vector<2x16xf32>
    %290 = arith.mulf %289, %288 : vector<2x16xf32>
    %291 = vector.extract_strided_slice %282 {offsets = [0, 16], sizes = [2, 16], strides = [1, 1]} : vector<2x64xf32> to vector<2x16xf32>
    %cst_97 = arith.constant 5.000000e-01 : f32
    %292 = vector.broadcast %cst_97 : f32 to vector<2x16xf32>
    %293 = arith.mulf %292, %291 : vector<2x16xf32>
    %294 = math.tanh %293 : vector<2x16xf32>
    %cst_98 = arith.constant 1.000000e+00 : f32
    %295 = vector.broadcast %cst_98 : f32 to vector<2x16xf32>
    %296 = arith.addf %294, %295 : vector<2x16xf32>
    %cst_99 = arith.constant 5.000000e-01 : f32
    %297 = vector.broadcast %cst_99 : f32 to vector<2x16xf32>
    %298 = arith.mulf %297, %296 : vector<2x16xf32>
    %299 = vector.extract_strided_slice %282 {offsets = [0, 32], sizes = [2, 16], strides = [1, 1]} : vector<2x64xf32> to vector<2x16xf32>
    %300 = math.tanh %299 : vector<2x16xf32>
    %301 = vector.extract_strided_slice %282 {offsets = [0, 48], sizes = [2, 16], strides = [1, 1]} : vector<2x64xf32> to vector<2x16xf32>
    %cst_100 = arith.constant 5.000000e-01 : f32
    %302 = vector.broadcast %cst_100 : f32 to vector<2x16xf32>
    %303 = arith.mulf %302, %301 : vector<2x16xf32>
    %304 = math.tanh %303 : vector<2x16xf32>
    %cst_101 = arith.constant 1.000000e+00 : f32
    %305 = vector.broadcast %cst_101 : f32 to vector<2x16xf32>
    %306 = arith.addf %304, %305 : vector<2x16xf32>
    %cst_102 = arith.constant 5.000000e-01 : f32
    %307 = vector.broadcast %cst_102 : f32 to vector<2x16xf32>
    %308 = arith.mulf %307, %306 : vector<2x16xf32>
    %309 = arith.mulf %298, %273 : vector<2x16xf32>
    %310 = arith.mulf %290, %300 : vector<2x16xf32>
    %311 = arith.addf %309, %310 : vector<2x16xf32>
    %312 = math.tanh %311 : vector<2x16xf32>
    %313 = arith.mulf %308, %312 : vector<2x16xf32>
    %c0_103 = arith.constant 0 : index
    %c0_104 = arith.constant 0 : index
    %314 = vector.load %arg13[%c0_103, %c0_104] : memref<16x16xf32, #tpu.memory_space<vmem>>, vector<2x16xf32>
    tpu.vector_store %arg13[%c0_103, %c0_104], %313 {strides = array<i32>} : memref<16x16xf32, #tpu.memory_space<vmem>>, vector<2x16xf32>,
    %cst_105 = arith.constant 0.000000e+00 : f32
    %315 = vector.broadcast %cst_105 : f32 to vector<2x16xf32>
    %cst_106 = arith.constant 0.000000e+00 : f32
    %316 = vector.broadcast %cst_106 : f32 to vector<2x16xf32>
    %317 = vector.extract_strided_slice %6 {offsets = [0, 0], sizes = [2, 64], strides = [1, 1]} : vector<16x64xf32> to vector<2x64xf32>
    %318 = arith.truncf %315 : vector<2x16xf32> to vector<2x16xbf16>
    %cst_107 = arith.constant dense<0.000000e+00> : vector<2x64xf32>
    %319 = tpu.matmul %318, %1, %cst_107 {dimension_numbers = #tpu.dot_dimension_numbers<[1], [0], [0], [1], [0, 0, 1, 1], [], []>} : vector<2x16xbf16>, vector<16x64xbf16>, vector<2x64xf32> -> vector<2x64xf32>
    %320 = arith.addf %317, %319 : vector<2x64xf32>
    %321 = vector.broadcast %3 : vector<1x64xf32> to vector<2x64xf32>
    %322 = arith.addf %320, %321 : vector<2x64xf32>
    %323 = vector.extract_strided_slice %322 {offsets = [0, 0], sizes = [2, 16], strides = [1, 1]} : vector<2x64xf32> to vector<2x16xf32>
    %cst_108 = arith.constant 5.000000e-01 : f32
    %324 = vector.broadcast %cst_108 : f32 to vector<2x16xf32>
    %325 = arith.mulf %324, %323 : vector<2x16xf32>
    %326 = math.tanh %325 : vector<2x16xf32>
    %cst_109 = arith.constant 1.000000e+00 : f32
    %327 = vector.broadcast %cst_109 : f32 to vector<2x16xf32>
    %328 = arith.addf %326, %327 : vector<2x16xf32>
    %cst_110 = arith.constant 5.000000e-01 : f32
    %329 = vector.broadcast %cst_110 : f32 to vector<2x16xf32>
    %330 = arith.mulf %329, %328 : vector<2x16xf32>
    %331 = vector.extract_strided_slice %322 {offsets = [0, 16], sizes = [2, 16], strides = [1, 1]} : vector<2x64xf32> to vector<2x16xf32>
    %cst_111 = arith.constant 5.000000e-01 : f32
    %332 = vector.broadcast %cst_111 : f32 to vector<2x16xf32>
    %333 = arith.mulf %332, %331 : vector<2x16xf32>
    %334 = math.tanh %333 : vector<2x16xf32>
    %cst_112 = arith.constant 1.000000e+00 : f32
    %335 = vector.broadcast %cst_112 : f32 to vector<2x16xf32>
    %336 = arith.addf %334, %335 : vector<2x16xf32>
    %cst_113 = arith.constant 5.000000e-01 : f32
    %337 = vector.broadcast %cst_113 : f32 to vector<2x16xf32>
    %338 = arith.mulf %337, %336 : vector<2x16xf32>
    %339 = vector.extract_strided_slice %322 {offsets = [0, 32], sizes = [2, 16], strides = [1, 1]} : vector<2x64xf32> to vector<2x16xf32>
    %340 = math.tanh %339 : vector<2x16xf32>
    %341 = vector.extract_strided_slice %322 {offsets = [0, 48], sizes = [2, 16], strides = [1, 1]} : vector<2x64xf32> to vector<2x16xf32>
    %cst_114 = arith.constant 5.000000e-01 : f32
    %342 = vector.broadcast %cst_114 : f32 to vector<2x16xf32>
    %343 = arith.mulf %342, %341 : vector<2x16xf32>
    %344 = math.tanh %343 : vector<2x16xf32>
    %cst_115 = arith.constant 1.000000e+00 : f32
    %345 = vector.broadcast %cst_115 : f32 to vector<2x16xf32>
    %346 = arith.addf %344, %345 : vector<2x16xf32>
    %cst_116 = arith.constant 5.000000e-01 : f32
    %347 = vector.broadcast %cst_116 : f32 to vector<2x16xf32>
    %348 = arith.mulf %347, %346 : vector<2x16xf32>
    %349 = arith.mulf %338, %316 : vector<2x16xf32>
    %350 = arith.mulf %330, %340 : vector<2x16xf32>
    %351 = arith.addf %349, %350 : vector<2x16xf32>
    %352 = math.tanh %351 : vector<2x16xf32>
    %353 = arith.mulf %348, %352 : vector<2x16xf32>
    %c0_117 = arith.constant 0 : index
    %c0_118 = arith.constant 0 : index
    %354 = vector.load %arg12[%c0_117, %c0_118] : memref<16x16xf32, #tpu.memory_space<vmem>>, vector<2x16xf32>
    tpu.vector_store %arg12[%c0_117, %c0_118], %353 {strides = array<i32>} : memref<16x16xf32, #tpu.memory_space<vmem>>, vector<2x16xf32>,
    %355 = vector.extract_strided_slice %6 {offsets = [2, 0], sizes = [2, 64], strides = [1, 1]} : vector<16x64xf32> to vector<2x64xf32>
    %356 = arith.truncf %353 : vector<2x16xf32> to vector<2x16xbf16>
    %cst_119 = arith.constant dense<0.000000e+00> : vector<2x64xf32>
    %357 = tpu.matmul %356, %1, %cst_119 {dimension_numbers = #tpu.dot_dimension_numbers<[1], [0], [0], [1], [0, 0, 1, 1], [], []>} : vector<2x16xbf16>, vector<16x64xbf16>, vector<2x64xf32> -> vector<2x64xf32>
    %358 = arith.addf %355, %357 : vector<2x64xf32>
    %359 = vector.broadcast %3 : vector<1x64xf32> to vector<2x64xf32>
    %360 = arith.addf %358, %359 : vector<2x64xf32>
    %361 = vector.extract_strided_slice %360 {offsets = [0, 0], sizes = [2, 16], strides = [1, 1]} : vector<2x64xf32> to vector<2x16xf32>
    %cst_120 = arith.constant 5.000000e-01 : f32
    %362 = vector.broadcast %cst_120 : f32 to vector<2x16xf32>
    %363 = arith.mulf %362, %361 : vector<2x16xf32>
    %364 = math.tanh %363 : vector<2x16xf32>
    %cst_121 = arith.constant 1.000000e+00 : f32
    %365 = vector.broadcast %cst_121 : f32 to vector<2x16xf32>
    %366 = arith.addf %364, %365 : vector<2x16xf32>
    %cst_122 = arith.constant 5.000000e-01 : f32
    %367 = vector.broadcast %cst_122 : f32 to vector<2x16xf32>
    %368 = arith.mulf %367, %366 : vector<2x16xf32>
    %369 = vector.extract_strided_slice %360 {offsets = [0, 16], sizes = [2, 16], strides = [1, 1]} : vector<2x64xf32> to vector<2x16xf32>
    %cst_123 = arith.constant 5.000000e-01 : f32
    %370 = vector.broadcast %cst_123 : f32 to vector<2x16xf32>
    %371 = arith.mulf %370, %369 : vector<2x16xf32>
    %372 = math.tanh %371 : vector<2x16xf32>
    %cst_124 = arith.constant 1.000000e+00 : f32
    %373 = vector.broadcast %cst_124 : f32 to vector<2x16xf32>
    %374 = arith.addf %372, %373 : vector<2x16xf32>
    %cst_125 = arith.constant 5.000000e-01 : f32
    %375 = vector.broadcast %cst_125 : f32 to vector<2x16xf32>
    %376 = arith.mulf %375, %374 : vector<2x16xf32>
    %377 = vector.extract_strided_slice %360 {offsets = [0, 32], sizes = [2, 16], strides = [1, 1]} : vector<2x64xf32> to vector<2x16xf32>
    %378 = math.tanh %377 : vector<2x16xf32>
    %379 = vector.extract_strided_slice %360 {offsets = [0, 48], sizes = [2, 16], strides = [1, 1]} : vector<2x64xf32> to vector<2x16xf32>
    %cst_126 = arith.constant 5.000000e-01 : f32
    %380 = vector.broadcast %cst_126 : f32 to vector<2x16xf32>
    %381 = arith.mulf %380, %379 : vector<2x16xf32>
    %382 = math.tanh %381 : vector<2x16xf32>
    %cst_127 = arith.constant 1.000000e+00 : f32
    %383 = vector.broadcast %cst_127 : f32 to vector<2x16xf32>
    %384 = arith.addf %382, %383 : vector<2x16xf32>
    %cst_128 = arith.constant 5.000000e-01 : f32
    %385 = vector.broadcast %cst_128 : f32 to vector<2x16xf32>
    %386 = arith.mulf %385, %384 : vector<2x16xf32>
    %387 = arith.mulf %376, %351 : vector<2x16xf32>
    %388 = arith.mulf %368, %378 : vector<2x16xf32>
    %389 = arith.addf %387, %388 : vector<2x16xf32>
    %390 = math.tanh %389 : vector<2x16xf32>
    %391 = arith.mulf %386, %390 : vector<2x16xf32>
    %c2_129 = arith.constant 2 : index
    %c0_130 = arith.constant 0 : index
    %392 = vector.load %arg12[%c2_129, %c0_130] : memref<16x16xf32, #tpu.memory_space<vmem>>, vector<2x16xf32>
    tpu.vector_store %arg12[%c2_129, %c0_130], %391 {strides = array<i32>} : memref<16x16xf32, #tpu.memory_space<vmem>>, vector<2x16xf32>,
    %393 = vector.extract_strided_slice %6 {offsets = [4, 0], sizes = [2, 64], strides = [1, 1]} : vector<16x64xf32> to vector<2x64xf32>
    %394 = arith.truncf %391 : vector<2x16xf32> to vector<2x16xbf16>
    %cst_131 = arith.constant dense<0.000000e+00> : vector<2x64xf32>
    %395 = tpu.matmul %394, %1, %cst_131 {dimension_numbers = #tpu.dot_dimension_numbers<[1], [0], [0], [1], [0, 0, 1, 1], [], []>} : vector<2x16xbf16>, vector<16x64xbf16>, vector<2x64xf32> -> vector<2x64xf32>
    %396 = arith.addf %393, %395 : vector<2x64xf32>
    %397 = vector.broadcast %3 : vector<1x64xf32> to vector<2x64xf32>
    %398 = arith.addf %396, %397 : vector<2x64xf32>
    %399 = vector.extract_strided_slice %398 {offsets = [0, 0], sizes = [2, 16], strides = [1, 1]} : vector<2x64xf32> to vector<2x16xf32>
    %cst_132 = arith.constant 5.000000e-01 : f32
    %400 = vector.broadcast %cst_132 : f32 to vector<2x16xf32>
    %401 = arith.mulf %400, %399 : vector<2x16xf32>
    %402 = math.tanh %401 : vector<2x16xf32>
    %cst_133 = arith.constant 1.000000e+00 : f32
    %403 = vector.broadcast %cst_133 : f32 to vector<2x16xf32>
    %404 = arith.addf %402, %403 : vector<2x16xf32>
    %cst_134 = arith.constant 5.000000e-01 : f32
    %405 = vector.broadcast %cst_134 : f32 to vector<2x16xf32>
    %406 = arith.mulf %405, %404 : vector<2x16xf32>
    %407 = vector.extract_strided_slice %398 {offsets = [0, 16], sizes = [2, 16], strides = [1, 1]} : vector<2x64xf32> to vector<2x16xf32>
    %cst_135 = arith.constant 5.000000e-01 : f32
    %408 = vector.broadcast %cst_135 : f32 to vector<2x16xf32>
    %409 = arith.mulf %408, %407 : vector<2x16xf32>
    %410 = math.tanh %409 : vector<2x16xf32>
    %cst_136 = arith.constant 1.000000e+00 : f32
    %411 = vector.broadcast %cst_136 : f32 to vector<2x16xf32>
    %412 = arith.addf %410, %411 : vector<2x16xf32>
    %cst_137 = arith.constant 5.000000e-01 : f32
    %413 = vector.broadcast %cst_137 : f32 to vector<2x16xf32>
    %414 = arith.mulf %413, %412 : vector<2x16xf32>
    %415 = vector.extract_strided_slice %398 {offsets = [0, 32], sizes = [2, 16], strides = [1, 1]} : vector<2x64xf32> to vector<2x16xf32>
    %416 = math.tanh %415 : vector<2x16xf32>
    %417 = vector.extract_strided_slice %398 {offsets = [0, 48], sizes = [2, 16], strides = [1, 1]} : vector<2x64xf32> to vector<2x16xf32>
    %cst_138 = arith.constant 5.000000e-01 : f32
    %418 = vector.broadcast %cst_138 : f32 to vector<2x16xf32>
    %419 = arith.mulf %418, %417 : vector<2x16xf32>
    %420 = math.tanh %419 : vector<2x16xf32>
    %cst_139 = arith.constant 1.000000e+00 : f32
    %421 = vector.broadcast %cst_139 : f32 to vector<2x16xf32>
    %422 = arith.addf %420, %421 : vector<2x16xf32>
    %cst_140 = arith.constant 5.000000e-01 : f32
    %423 = vector.broadcast %cst_140 : f32 to vector<2x16xf32>
    %424 = arith.mulf %423, %422 : vector<2x16xf32>
    %425 = arith.mulf %414, %389 : vector<2x16xf32>
    %426 = arith.mulf %406, %416 : vector<2x16xf32>
    %427 = arith.addf %425, %426 : vector<2x16xf32>
    %428 = math.tanh %427 : vector<2x16xf32>
    %429 = arith.mulf %424, %428 : vector<2x16xf32>
    %c4_141 = arith.constant 4 : index
    %c0_142 = arith.constant 0 : index
    %430 = vector.load %arg12[%c4_141, %c0_142] : memref<16x16xf32, #tpu.memory_space<vmem>>, vector<2x16xf32>
    tpu.vector_store %arg12[%c4_141, %c0_142], %429 {strides = array<i32>} : memref<16x16xf32, #tpu.memory_space<vmem>>, vector<2x16xf32>,
    %431 = vector.extract_strided_slice %6 {offsets = [6, 0], sizes = [2, 64], strides = [1, 1]} : vector<16x64xf32> to vector<2x64xf32>
    %432 = arith.truncf %429 : vector<2x16xf32> to vector<2x16xbf16>
    %cst_143 = arith.constant dense<0.000000e+00> : vector<2x64xf32>
    %433 = tpu.matmul %432, %1, %cst_143 {dimension_numbers = #tpu.dot_dimension_numbers<[1], [0], [0], [1], [0, 0, 1, 1], [], []>} : vector<2x16xbf16>, vector<16x64xbf16>, vector<2x64xf32> -> vector<2x64xf32>
    %434 = arith.addf %431, %433 : vector<2x64xf32>
    %435 = vector.broadcast %3 : vector<1x64xf32> to vector<2x64xf32>
    %436 = arith.addf %434, %435 : vector<2x64xf32>
    %437 = vector.extract_strided_slice %436 {offsets = [0, 0], sizes = [2, 16], strides = [1, 1]} : vector<2x64xf32> to vector<2x16xf32>
    %cst_144 = arith.constant 5.000000e-01 : f32
    %438 = vector.broadcast %cst_144 : f32 to vector<2x16xf32>
    %439 = arith.mulf %438, %437 : vector<2x16xf32>
    %440 = math.tanh %439 : vector<2x16xf32>
    %cst_145 = arith.constant 1.000000e+00 : f32
    %441 = vector.broadcast %cst_145 : f32 to vector<2x16xf32>
    %442 = arith.addf %440, %441 : vector<2x16xf32>
    %cst_146 = arith.constant 5.000000e-01 : f32
    %443 = vector.broadcast %cst_146 : f32 to vector<2x16xf32>
    %444 = arith.mulf %443, %442 : vector<2x16xf32>
    %445 = vector.extract_strided_slice %436 {offsets = [0, 16], sizes = [2, 16], strides = [1, 1]} : vector<2x64xf32> to vector<2x16xf32>
    %cst_147 = arith.constant 5.000000e-01 : f32
    %446 = vector.broadcast %cst_147 : f32 to vector<2x16xf32>
    %447 = arith.mulf %446, %445 : vector<2x16xf32>
    %448 = math.tanh %447 : vector<2x16xf32>
    %cst_148 = arith.constant 1.000000e+00 : f32
    %449 = vector.broadcast %cst_148 : f32 to vector<2x16xf32>
    %450 = arith.addf %448, %449 : vector<2x16xf32>
    %cst_149 = arith.constant 5.000000e-01 : f32
    %451 = vector.broadcast %cst_149 : f32 to vector<2x16xf32>
    %452 = arith.mulf %451, %450 : vector<2x16xf32>
    %453 = vector.extract_strided_slice %436 {offsets = [0, 32], sizes = [2, 16], strides = [1, 1]} : vector<2x64xf32> to vector<2x16xf32>
    %454 = math.tanh %453 : vector<2x16xf32>
    %455 = vector.extract_strided_slice %436 {offsets = [0, 48], sizes = [2, 16], strides = [1, 1]} : vector<2x64xf32> to vector<2x16xf32>
    %cst_150 = arith.constant 5.000000e-01 : f32
    %456 = vector.broadcast %cst_150 : f32 to vector<2x16xf32>
    %457 = arith.mulf %456, %455 : vector<2x16xf32>
    %458 = math.tanh %457 : vector<2x16xf32>
    %cst_151 = arith.constant 1.000000e+00 : f32
    %459 = vector.broadcast %cst_151 : f32 to vector<2x16xf32>
    %460 = arith.addf %458, %459 : vector<2x16xf32>
    %cst_152 = arith.constant 5.000000e-01 : f32
    %461 = vector.broadcast %cst_152 : f32 to vector<2x16xf32>
    %462 = arith.mulf %461, %460 : vector<2x16xf32>
    %463 = arith.mulf %452, %427 : vector<2x16xf32>
    %464 = arith.mulf %444, %454 : vector<2x16xf32>
    %465 = arith.addf %463, %464 : vector<2x16xf32>
    %466 = math.tanh %465 : vector<2x16xf32>
    %467 = arith.mulf %462, %466 : vector<2x16xf32>
    %c6_153 = arith.constant 6 : index
    %c0_154 = arith.constant 0 : index
    %468 = vector.load %arg12[%c6_153, %c0_154] : memref<16x16xf32, #tpu.memory_space<vmem>>, vector<2x16xf32>
    tpu.vector_store %arg12[%c6_153, %c0_154], %467 {strides = array<i32>} : memref<16x16xf32, #tpu.memory_space<vmem>>, vector<2x16xf32>,
    %469 = vector.extract_strided_slice %6 {offsets = [8, 0], sizes = [2, 64], strides = [1, 1]} : vector<16x64xf32> to vector<2x64xf32>
    %470 = arith.truncf %467 : vector<2x16xf32> to vector<2x16xbf16>
    %cst_155 = arith.constant dense<0.000000e+00> : vector<2x64xf32>
    %471 = tpu.matmul %470, %1, %cst_155 {dimension_numbers = #tpu.dot_dimension_numbers<[1], [0], [0], [1], [0, 0, 1, 1], [], []>} : vector<2x16xbf16>, vector<16x64xbf16>, vector<2x64xf32> -> vector<2x64xf32>
    %472 = arith.addf %469, %471 : vector<2x64xf32>
    %473 = vector.broadcast %3 : vector<1x64xf32> to vector<2x64xf32>
    %474 = arith.addf %472, %473 : vector<2x64xf32>
    %475 = vector.extract_strided_slice %474 {offsets = [0, 0], sizes = [2, 16], strides = [1, 1]} : vector<2x64xf32> to vector<2x16xf32>
    %cst_156 = arith.constant 5.000000e-01 : f32
    %476 = vector.broadcast %cst_156 : f32 to vector<2x16xf32>
    %477 = arith.mulf %476, %475 : vector<2x16xf32>
    %478 = math.tanh %477 : vector<2x16xf32>
    %cst_157 = arith.constant 1.000000e+00 : f32
    %479 = vector.broadcast %cst_157 : f32 to vector<2x16xf32>
    %480 = arith.addf %478, %479 : vector<2x16xf32>
    %cst_158 = arith.constant 5.000000e-01 : f32
    %481 = vector.broadcast %cst_158 : f32 to vector<2x16xf32>
    %482 = arith.mulf %481, %480 : vector<2x16xf32>
    %483 = vector.extract_strided_slice %474 {offsets = [0, 16], sizes = [2, 16], strides = [1, 1]} : vector<2x64xf32> to vector<2x16xf32>
    %cst_159 = arith.constant 5.000000e-01 : f32
    %484 = vector.broadcast %cst_159 : f32 to vector<2x16xf32>
    %485 = arith.mulf %484, %483 : vector<2x16xf32>
    %486 = math.tanh %485 : vector<2x16xf32>
    %cst_160 = arith.constant 1.000000e+00 : f32
    %487 = vector.broadcast %cst_160 : f32 to vector<2x16xf32>
    %488 = arith.addf %486, %487 : vector<2x16xf32>
    %cst_161 = arith.constant 5.000000e-01 : f32
    %489 = vector.broadcast %cst_161 : f32 to vector<2x16xf32>
    %490 = arith.mulf %489, %488 : vector<2x16xf32>
    %491 = vector.extract_strided_slice %474 {offsets = [0, 32], sizes = [2, 16], strides = [1, 1]} : vector<2x64xf32> to vector<2x16xf32>
    %492 = math.tanh %491 : vector<2x16xf32>
    %493 = vector.extract_strided_slice %474 {offsets = [0, 48], sizes = [2, 16], strides = [1, 1]} : vector<2x64xf32> to vector<2x16xf32>
    %cst_162 = arith.constant 5.000000e-01 : f32
    %494 = vector.broadcast %cst_162 : f32 to vector<2x16xf32>
    %495 = arith.mulf %494, %493 : vector<2x16xf32>
    %496 = math.tanh %495 : vector<2x16xf32>
    %cst_163 = arith.constant 1.000000e+00 : f32
    %497 = vector.broadcast %cst_163 : f32 to vector<2x16xf32>
    %498 = arith.addf %496, %497 : vector<2x16xf32>
    %cst_164 = arith.constant 5.000000e-01 : f32
    %499 = vector.broadcast %cst_164 : f32 to vector<2x16xf32>
    %500 = arith.mulf %499, %498 : vector<2x16xf32>
    %501 = arith.mulf %490, %465 : vector<2x16xf32>
    %502 = arith.mulf %482, %492 : vector<2x16xf32>
    %503 = arith.addf %501, %502 : vector<2x16xf32>
    %504 = math.tanh %503 : vector<2x16xf32>
    %505 = arith.mulf %500, %504 : vector<2x16xf32>
    %c8_165 = arith.constant 8 : index
    %c0_166 = arith.constant 0 : index
    %506 = vector.load %arg12[%c8_165, %c0_166] : memref<16x16xf32, #tpu.memory_space<vmem>>, vector<2x16xf32>
    tpu.vector_store %arg12[%c8_165, %c0_166], %505 {strides = array<i32>} : memref<16x16xf32, #tpu.memory_space<vmem>>, vector<2x16xf32>,
    %507 = vector.extract_strided_slice %6 {offsets = [10, 0], sizes = [2, 64], strides = [1, 1]} : vector<16x64xf32> to vector<2x64xf32>
    %508 = arith.truncf %505 : vector<2x16xf32> to vector<2x16xbf16>
    %cst_167 = arith.constant dense<0.000000e+00> : vector<2x64xf32>
    %509 = tpu.matmul %508, %1, %cst_167 {dimension_numbers = #tpu.dot_dimension_numbers<[1], [0], [0], [1], [0, 0, 1, 1], [], []>} : vector<2x16xbf16>, vector<16x64xbf16>, vector<2x64xf32> -> vector<2x64xf32>
    %510 = arith.addf %507, %509 : vector<2x64xf32>
    %511 = vector.broadcast %3 : vector<1x64xf32> to vector<2x64xf32>
    %512 = arith.addf %510, %511 : vector<2x64xf32>
    %513 = vector.extract_strided_slice %512 {offsets = [0, 0], sizes = [2, 16], strides = [1, 1]} : vector<2x64xf32> to vector<2x16xf32>
    %cst_168 = arith.constant 5.000000e-01 : f32
    %514 = vector.broadcast %cst_168 : f32 to vector<2x16xf32>
    %515 = arith.mulf %514, %513 : vector<2x16xf32>
    %516 = math.tanh %515 : vector<2x16xf32>
    %cst_169 = arith.constant 1.000000e+00 : f32
    %517 = vector.broadcast %cst_169 : f32 to vector<2x16xf32>
    %518 = arith.addf %516, %517 : vector<2x16xf32>
    %cst_170 = arith.constant 5.000000e-01 : f32
    %519 = vector.broadcast %cst_170 : f32 to vector<2x16xf32>
    %520 = arith.mulf %519, %518 : vector<2x16xf32>
    %521 = vector.extract_strided_slice %512 {offsets = [0, 16], sizes = [2, 16], strides = [1, 1]} : vector<2x64xf32> to vector<2x16xf32>
    %cst_171 = arith.constant 5.000000e-01 : f32
    %522 = vector.broadcast %cst_171 : f32 to vector<2x16xf32>
    %523 = arith.mulf %522, %521 : vector<2x16xf32>
    %524 = math.tanh %523 : vector<2x16xf32>
    %cst_172 = arith.constant 1.000000e+00 : f32
    %525 = vector.broadcast %cst_172 : f32 to vector<2x16xf32>
    %526 = arith.addf %524, %525 : vector<2x16xf32>
    %cst_173 = arith.constant 5.000000e-01 : f32
    %527 = vector.broadcast %cst_173 : f32 to vector<2x16xf32>
    %528 = arith.mulf %527, %526 : vector<2x16xf32>
    %529 = vector.extract_strided_slice %512 {offsets = [0, 32], sizes = [2, 16], strides = [1, 1]} : vector<2x64xf32> to vector<2x16xf32>
    %530 = math.tanh %529 : vector<2x16xf32>
    %531 = vector.extract_strided_slice %512 {offsets = [0, 48], sizes = [2, 16], strides = [1, 1]} : vector<2x64xf32> to vector<2x16xf32>
    %cst_174 = arith.constant 5.000000e-01 : f32
    %532 = vector.broadcast %cst_174 : f32 to vector<2x16xf32>
    %533 = arith.mulf %532, %531 : vector<2x16xf32>
    %534 = math.tanh %533 : vector<2x16xf32>
    %cst_175 = arith.constant 1.000000e+00 : f32
    %535 = vector.broadcast %cst_175 : f32 to vector<2x16xf32>
    %536 = arith.addf %534, %535 : vector<2x16xf32>
    %cst_176 = arith.constant 5.000000e-01 : f32
    %537 = vector.broadcast %cst_176 : f32 to vector<2x16xf32>
    %538 = arith.mulf %537, %536 : vector<2x16xf32>
    %539 = arith.mulf %528, %503 : vector<2x16xf32>
    %540 = arith.mulf %520, %530 : vector<2x16xf32>
    %541 = arith.addf %539, %540 : vector<2x16xf32>
    %542 = math.tanh %541 : vector<2x16xf32>
    %543 = arith.mulf %538, %542 : vector<2x16xf32>
    %c10_177 = arith.constant 10 : index
    %c0_178 = arith.constant 0 : index
    %544 = vector.load %arg12[%c10_177, %c0_178] : memref<16x16xf32, #tpu.memory_space<vmem>>, vector<2x16xf32>
    tpu.vector_store %arg12[%c10_177, %c0_178], %543 {strides = array<i32>} : memref<16x16xf32, #tpu.memory_space<vmem>>, vector<2x16xf32>,
    %545 = vector.extract_strided_slice %6 {offsets = [12, 0], sizes = [2, 64], strides = [1, 1]} : vector<16x64xf32> to vector<2x64xf32>
    %546 = arith.truncf %543 : vector<2x16xf32> to vector<2x16xbf16>
    %cst_179 = arith.constant dense<0.000000e+00> : vector<2x64xf32>
    %547 = tpu.matmul %546, %1, %cst_179 {dimension_numbers = #tpu.dot_dimension_numbers<[1], [0], [0], [1], [0, 0, 1, 1], [], []>} : vector<2x16xbf16>, vector<16x64xbf16>, vector<2x64xf32> -> vector<2x64xf32>
    %548 = arith.addf %545, %547 : vector<2x64xf32>
    %549 = vector.broadcast %3 : vector<1x64xf32> to vector<2x64xf32>
    %550 = arith.addf %548, %549 : vector<2x64xf32>
    %551 = vector.extract_strided_slice %550 {offsets = [0, 0], sizes = [2, 16], strides = [1, 1]} : vector<2x64xf32> to vector<2x16xf32>
    %cst_180 = arith.constant 5.000000e-01 : f32
    %552 = vector.broadcast %cst_180 : f32 to vector<2x16xf32>
    %553 = arith.mulf %552, %551 : vector<2x16xf32>
    %554 = math.tanh %553 : vector<2x16xf32>
    %cst_181 = arith.constant 1.000000e+00 : f32
    %555 = vector.broadcast %cst_181 : f32 to vector<2x16xf32>
    %556 = arith.addf %554, %555 : vector<2x16xf32>
    %cst_182 = arith.constant 5.000000e-01 : f32
    %557 = vector.broadcast %cst_182 : f32 to vector<2x16xf32>
    %558 = arith.mulf %557, %556 : vector<2x16xf32>
    %559 = vector.extract_strided_slice %550 {offsets = [0, 16], sizes = [2, 16], strides = [1, 1]} : vector<2x64xf32> to vector<2x16xf32>
    %cst_183 = arith.constant 5.000000e-01 : f32
    %560 = vector.broadcast %cst_183 : f32 to vector<2x16xf32>
    %561 = arith.mulf %560, %559 : vector<2x16xf32>
    %562 = math.tanh %561 : vector<2x16xf32>
    %cst_184 = arith.constant 1.000000e+00 : f32
    %563 = vector.broadcast %cst_184 : f32 to vector<2x16xf32>
    %564 = arith.addf %562, %563 : vector<2x16xf32>
    %cst_185 = arith.constant 5.000000e-01 : f32
    %565 = vector.broadcast %cst_185 : f32 to vector<2x16xf32>
    %566 = arith.mulf %565, %564 : vector<2x16xf32>
    %567 = vector.extract_strided_slice %550 {offsets = [0, 32], sizes = [2, 16], strides = [1, 1]} : vector<2x64xf32> to vector<2x16xf32>
    %568 = math.tanh %567 : vector<2x16xf32>
    %569 = vector.extract_strided_slice %550 {offsets = [0, 48], sizes = [2, 16], strides = [1, 1]} : vector<2x64xf32> to vector<2x16xf32>
    %cst_186 = arith.constant 5.000000e-01 : f32
    %570 = vector.broadcast %cst_186 : f32 to vector<2x16xf32>
    %571 = arith.mulf %570, %569 : vector<2x16xf32>
    %572 = math.tanh %571 : vector<2x16xf32>
    %cst_187 = arith.constant 1.000000e+00 : f32
    %573 = vector.broadcast %cst_187 : f32 to vector<2x16xf32>
    %574 = arith.addf %572, %573 : vector<2x16xf32>
    %cst_188 = arith.constant 5.000000e-01 : f32
    %575 = vector.broadcast %cst_188 : f32 to vector<2x16xf32>
    %576 = arith.mulf %575, %574 : vector<2x16xf32>
    %577 = arith.mulf %566, %541 : vector<2x16xf32>
    %578 = arith.mulf %558, %568 : vector<2x16xf32>
    %579 = arith.addf %577, %578 : vector<2x16xf32>
    %580 = math.tanh %579 : vector<2x16xf32>
    %581 = arith.mulf %576, %580 : vector<2x16xf32>
    %c12_189 = arith.constant 12 : index
    %c0_190 = arith.constant 0 : index
    %582 = vector.load %arg12[%c12_189, %c0_190] : memref<16x16xf32, #tpu.memory_space<vmem>>, vector<2x16xf32>
    tpu.vector_store %arg12[%c12_189, %c0_190], %581 {strides = array<i32>} : memref<16x16xf32, #tpu.memory_space<vmem>>, vector<2x16xf32>,
    %583 = vector.extract_strided_slice %6 {offsets = [14, 0], sizes = [2, 64], strides = [1, 1]} : vector<16x64xf32> to vector<2x64xf32>
    %584 = arith.truncf %581 : vector<2x16xf32> to vector<2x16xbf16>
    %cst_191 = arith.constant dense<0.000000e+00> : vector<2x64xf32>
    %585 = tpu.matmul %584, %1, %cst_191 {dimension_numbers = #tpu.dot_dimension_numbers<[1], [0], [0], [1], [0, 0, 1, 1], [], []>} : vector<2x16xbf16>, vector<16x64xbf16>, vector<2x64xf32> -> vector<2x64xf32>
    %586 = arith.addf %583, %585 : vector<2x64xf32>
    %587 = vector.broadcast %3 : vector<1x64xf32> to vector<2x64xf32>
    %588 = arith.addf %586, %587 : vector<2x64xf32>
    %589 = vector.extract_strided_slice %588 {offsets = [0, 0], sizes = [2, 16], strides = [1, 1]} : vector<2x64xf32> to vector<2x16xf32>
    %cst_192 = arith.constant 5.000000e-01 : f32
    %590 = vector.broadcast %cst_192 : f32 to vector<2x16xf32>
    %591 = arith.mulf %590, %589 : vector<2x16xf32>
    %592 = math.tanh %591 : vector<2x16xf32>
    %cst_193 = arith.constant 1.000000e+00 : f32
    %593 = vector.broadcast %cst_193 : f32 to vector<2x16xf32>
    %594 = arith.addf %592, %593 : vector<2x16xf32>
    %cst_194 = arith.constant 5.000000e-01 : f32
    %595 = vector.broadcast %cst_194 : f32 to vector<2x16xf32>
    %596 = arith.mulf %595, %594 : vector<2x16xf32>
    %597 = vector.extract_strided_slice %588 {offsets = [0, 16], sizes = [2, 16], strides = [1, 1]} : vector<2x64xf32> to vector<2x16xf32>
    %cst_195 = arith.constant 5.000000e-01 : f32
    %598 = vector.broadcast %cst_195 : f32 to vector<2x16xf32>
    %599 = arith.mulf %598, %597 : vector<2x16xf32>
    %600 = math.tanh %599 : vector<2x16xf32>
    %cst_196 = arith.constant 1.000000e+00 : f32
    %601 = vector.broadcast %cst_196 : f32 to vector<2x16xf32>
    %602 = arith.addf %600, %601 : vector<2x16xf32>
    %cst_197 = arith.constant 5.000000e-01 : f32
    %603 = vector.broadcast %cst_197 : f32 to vector<2x16xf32>
    %604 = arith.mulf %603, %602 : vector<2x16xf32>
    %605 = vector.extract_strided_slice %588 {offsets = [0, 32], sizes = [2, 16], strides = [1, 1]} : vector<2x64xf32> to vector<2x16xf32>
    %606 = math.tanh %605 : vector<2x16xf32>
    %607 = vector.extract_strided_slice %588 {offsets = [0, 48], sizes = [2, 16], strides = [1, 1]} : vector<2x64xf32> to vector<2x16xf32>
    %cst_198 = arith.constant 5.000000e-01 : f32
    %608 = vector.broadcast %cst_198 : f32 to vector<2x16xf32>
    %609 = arith.mulf %608, %607 : vector<2x16xf32>
    %610 = math.tanh %609 : vector<2x16xf32>
    %cst_199 = arith.constant 1.000000e+00 : f32
    %611 = vector.broadcast %cst_199 : f32 to vector<2x16xf32>
    %612 = arith.addf %610, %611 : vector<2x16xf32>
    %cst_200 = arith.constant 5.000000e-01 : f32
    %613 = vector.broadcast %cst_200 : f32 to vector<2x16xf32>
    %614 = arith.mulf %613, %612 : vector<2x16xf32>
    %615 = arith.mulf %604, %579 : vector<2x16xf32>
    %616 = arith.mulf %596, %606 : vector<2x16xf32>
    %617 = arith.addf %615, %616 : vector<2x16xf32>
    %618 = math.tanh %617 : vector<2x16xf32>
    %619 = arith.mulf %614, %618 : vector<2x16xf32>
    %c14_201 = arith.constant 14 : index
    %c0_202 = arith.constant 0 : index
    %620 = vector.load %arg12[%c14_201, %c0_202] : memref<16x16xf32, #tpu.memory_space<vmem>>, vector<2x16xf32>
    tpu.vector_store %arg12[%c14_201, %c0_202], %619 {strides = array<i32>} : memref<16x16xf32, #tpu.memory_space<vmem>>, vector<2x16xf32>,
    %c0_203 = arith.constant 0 : index
    %c0_204 = arith.constant 0 : index
    %621 = vector.load %arg12[%c0_203, %c0_204] : memref<16x16xf32, #tpu.memory_space<vmem>>, vector<16x16xf32>
    %622 = arith.truncf %621 : vector<16x16xf32> to vector<16x16xbf16>
    %c0_205 = arith.constant 0 : index
    %c0_206 = arith.constant 0 : index
    %623 = vector.load %arg7[%c0_205, %c0_206] : memref<16x128xbf16, #tpu.memory_space<vmem>>, vector<16x128xbf16>
    %cst_207 = arith.constant dense<0.000000e+00> : vector<16x128xf32>
    %624 = tpu.matmul %622, %623, %cst_207 {dimension_numbers = #tpu.dot_dimension_numbers<[1], [0], [0], [1], [0, 0, 1, 1], [], []>} : vector<16x16xbf16>, vector<16x128xbf16>, vector<16x128xf32> -> vector<16x128xf32>
    %c0_208 = arith.constant 0 : index
    %c0_209 = arith.constant 0 : index
    %625 = vector.load %arg13[%c0_208, %c0_209] : memref<16x16xf32, #tpu.memory_space<vmem>>, vector<16x16xf32>
    %626 = arith.truncf %625 : vector<16x16xf32> to vector<16x16xbf16>
    %c0_210 = arith.constant 0 : index
    %c0_211 = arith.constant 0 : index
    %627 = vector.load %arg8[%c0_210, %c0_211] : memref<16x128xbf16, #tpu.memory_space<vmem>>, vector<16x128xbf16>
    %cst_212 = arith.constant dense<0.000000e+00> : vector<16x128xf32>
    %628 = tpu.matmul %626, %627, %cst_212 {dimension_numbers = #tpu.dot_dimension_numbers<[1], [0], [0], [1], [0, 0, 1, 1], [], []>} : vector<16x16xbf16>, vector<16x128xbf16>, vector<16x128xf32> -> vector<16x128xf32>
    %629 = arith.addf %624, %628 : vector<16x128xf32>
    %c0_213 = arith.constant 0 : index
    %c0_214 = arith.constant 0 : index
    %630 = vector.load %arg10[%c0_213, %c0_214] : memref<1x128xf32, #tpu.memory_space<vmem>>, vector<1x128xf32>
    %631 = vector.broadcast %630 : vector<1x128xf32> to vector<16x128xf32>
    %632 = arith.addf %629, %631 : vector<16x128xf32>
    %c0_215 = arith.constant 0 : index
    %c0_216 = arith.constant 0 : index
    %633 = vector.load %arg9[%c0_215, %c0_216] : memref<32x128xbf16, #tpu.memory_space<vmem>>, vector<32x128xbf16>
    %cst_217 = arith.constant 0.000000e+00 : f32
    %634 = vector.broadcast %cst_217 : f32 to vector<2x32xf32>
    %cst_218 = arith.constant 0.000000e+00 : f32
    %635 = vector.broadcast %cst_218 : f32 to vector<2x32xf32>
    %636 = vector.extract_strided_slice %632 {offsets = [0, 0], sizes = [2, 128], strides = [1, 1]} : vector<16x128xf32> to vector<2x128xf32>
    %637 = arith.truncf %634 : vector<2x32xf32> to vector<2x32xbf16>
    %cst_219 = arith.constant dense<0.000000e+00> : vector<2x128xf32>
    %638 = tpu.matmul %637, %633, %cst_219 {dimension_numbers = #tpu.dot_dimension_numbers<[1], [0], [0], [1], [0, 0, 1, 1], [], []>} : vector<2x32xbf16>, vector<32x128xbf16>, vector<2x128xf32> -> vector<2x128xf32>
    %639 = arith.addf %636, %638 : vector<2x128xf32>
    %640 = vector.extract_strided_slice %639 {offsets = [0, 0], sizes = [2, 32], strides = [1, 1]} : vector<2x128xf32> to vector<2x32xf32>
    %cst_220 = arith.constant 5.000000e-01 : f32
    %641 = vector.broadcast %cst_220 : f32 to vector<2x32xf32>
    %642 = arith.mulf %641, %640 : vector<2x32xf32>
    %643 = math.tanh %642 : vector<2x32xf32>
    %cst_221 = arith.constant 1.000000e+00 : f32
    %644 = vector.broadcast %cst_221 : f32 to vector<2x32xf32>
    %645 = arith.addf %643, %644 : vector<2x32xf32>
    %cst_222 = arith.constant 5.000000e-01 : f32
    %646 = vector.broadcast %cst_222 : f32 to vector<2x32xf32>
    %647 = arith.mulf %646, %645 : vector<2x32xf32>
    %648 = vector.extract_strided_slice %639 {offsets = [0, 32], sizes = [2, 32], strides = [1, 1]} : vector<2x128xf32> to vector<2x32xf32>
    %cst_223 = arith.constant 5.000000e-01 : f32
    %649 = vector.broadcast %cst_223 : f32 to vector<2x32xf32>
    %650 = arith.mulf %649, %648 : vector<2x32xf32>
    %651 = math.tanh %650 : vector<2x32xf32>
    %cst_224 = arith.constant 1.000000e+00 : f32
    %652 = vector.broadcast %cst_224 : f32 to vector<2x32xf32>
    %653 = arith.addf %651, %652 : vector<2x32xf32>
    %cst_225 = arith.constant 5.000000e-01 : f32
    %654 = vector.broadcast %cst_225 : f32 to vector<2x32xf32>
    %655 = arith.mulf %654, %653 : vector<2x32xf32>
    %656 = vector.extract_strided_slice %639 {offsets = [0, 64], sizes = [2, 32], strides = [1, 1]} : vector<2x128xf32> to vector<2x32xf32>
    %657 = math.tanh %656 : vector<2x32xf32>
    %658 = vector.extract_strided_slice %639 {offsets = [0, 96], sizes = [2, 32], strides = [1, 1]} : vector<2x128xf32> to vector<2x32xf32>
    %cst_226 = arith.constant 5.000000e-01 : f32
    %659 = vector.broadcast %cst_226 : f32 to vector<2x32xf32>
    %660 = arith.mulf %659, %658 : vector<2x32xf32>
    %661 = math.tanh %660 : vector<2x32xf32>
    %cst_227 = arith.constant 1.000000e+00 : f32
    %662 = vector.broadcast %cst_227 : f32 to vector<2x32xf32>
    %663 = arith.addf %661, %662 : vector<2x32xf32>
    %cst_228 = arith.constant 5.000000e-01 : f32
    %664 = vector.broadcast %cst_228 : f32 to vector<2x32xf32>
    %665 = arith.mulf %664, %663 : vector<2x32xf32>
    %666 = arith.mulf %655, %635 : vector<2x32xf32>
    %667 = arith.mulf %647, %657 : vector<2x32xf32>
    %668 = arith.addf %666, %667 : vector<2x32xf32>
    %669 = math.tanh %668 : vector<2x32xf32>
    %670 = arith.mulf %665, %669 : vector<2x32xf32>
    %671 = vector.extract_strided_slice %632 {offsets = [2, 0], sizes = [2, 128], strides = [1, 1]} : vector<16x128xf32> to vector<2x128xf32>
    %672 = arith.truncf %670 : vector<2x32xf32> to vector<2x32xbf16>
    %cst_229 = arith.constant dense<0.000000e+00> : vector<2x128xf32>
    %673 = tpu.matmul %672, %633, %cst_229 {dimension_numbers = #tpu.dot_dimension_numbers<[1], [0], [0], [1], [0, 0, 1, 1], [], []>} : vector<2x32xbf16>, vector<32x128xbf16>, vector<2x128xf32> -> vector<2x128xf32>
    %674 = arith.addf %671, %673 : vector<2x128xf32>
    %675 = vector.extract_strided_slice %674 {offsets = [0, 0], sizes = [2, 32], strides = [1, 1]} : vector<2x128xf32> to vector<2x32xf32>
    %cst_230 = arith.constant 5.000000e-01 : f32
    %676 = vector.broadcast %cst_230 : f32 to vector<2x32xf32>
    %677 = arith.mulf %676, %675 : vector<2x32xf32>
    %678 = math.tanh %677 : vector<2x32xf32>
    %cst_231 = arith.constant 1.000000e+00 : f32
    %679 = vector.broadcast %cst_231 : f32 to vector<2x32xf32>
    %680 = arith.addf %678, %679 : vector<2x32xf32>
    %cst_232 = arith.constant 5.000000e-01 : f32
    %681 = vector.broadcast %cst_232 : f32 to vector<2x32xf32>
    %682 = arith.mulf %681, %680 : vector<2x32xf32>
    %683 = vector.extract_strided_slice %674 {offsets = [0, 32], sizes = [2, 32], strides = [1, 1]} : vector<2x128xf32> to vector<2x32xf32>
    %cst_233 = arith.constant 5.000000e-01 : f32
    %684 = vector.broadcast %cst_233 : f32 to vector<2x32xf32>
    %685 = arith.mulf %684, %683 : vector<2x32xf32>
    %686 = math.tanh %685 : vector<2x32xf32>
    %cst_234 = arith.constant 1.000000e+00 : f32
    %687 = vector.broadcast %cst_234 : f32 to vector<2x32xf32>
    %688 = arith.addf %686, %687 : vector<2x32xf32>
    %cst_235 = arith.constant 5.000000e-01 : f32
    %689 = vector.broadcast %cst_235 : f32 to vector<2x32xf32>
    %690 = arith.mulf %689, %688 : vector<2x32xf32>
    %691 = vector.extract_strided_slice %674 {offsets = [0, 64], sizes = [2, 32], strides = [1, 1]} : vector<2x128xf32> to vector<2x32xf32>
    %692 = math.tanh %691 : vector<2x32xf32>
    %693 = vector.extract_strided_slice %674 {offsets = [0, 96], sizes = [2, 32], strides = [1, 1]} : vector<2x128xf32> to vector<2x32xf32>
    %cst_236 = arith.constant 5.000000e-01 : f32
    %694 = vector.broadcast %cst_236 : f32 to vector<2x32xf32>
    %695 = arith.mulf %694, %693 : vector<2x32xf32>
    %696 = math.tanh %695 : vector<2x32xf32>
    %cst_237 = arith.constant 1.000000e+00 : f32
    %697 = vector.broadcast %cst_237 : f32 to vector<2x32xf32>
    %698 = arith.addf %696, %697 : vector<2x32xf32>
    %cst_238 = arith.constant 5.000000e-01 : f32
    %699 = vector.broadcast %cst_238 : f32 to vector<2x32xf32>
    %700 = arith.mulf %699, %698 : vector<2x32xf32>
    %701 = arith.mulf %690, %668 : vector<2x32xf32>
    %702 = arith.mulf %682, %692 : vector<2x32xf32>
    %703 = arith.addf %701, %702 : vector<2x32xf32>
    %704 = math.tanh %703 : vector<2x32xf32>
    %705 = arith.mulf %700, %704 : vector<2x32xf32>
    %706 = vector.extract_strided_slice %632 {offsets = [4, 0], sizes = [2, 128], strides = [1, 1]} : vector<16x128xf32> to vector<2x128xf32>
    %707 = arith.truncf %705 : vector<2x32xf32> to vector<2x32xbf16>
    %cst_239 = arith.constant dense<0.000000e+00> : vector<2x128xf32>
    %708 = tpu.matmul %707, %633, %cst_239 {dimension_numbers = #tpu.dot_dimension_numbers<[1], [0], [0], [1], [0, 0, 1, 1], [], []>} : vector<2x32xbf16>, vector<32x128xbf16>, vector<2x128xf32> -> vector<2x128xf32>
    %709 = arith.addf %706, %708 : vector<2x128xf32>
    %710 = vector.extract_strided_slice %709 {offsets = [0, 0], sizes = [2, 32], strides = [1, 1]} : vector<2x128xf32> to vector<2x32xf32>
    %cst_240 = arith.constant 5.000000e-01 : f32
    %711 = vector.broadcast %cst_240 : f32 to vector<2x32xf32>
    %712 = arith.mulf %711, %710 : vector<2x32xf32>
    %713 = math.tanh %712 : vector<2x32xf32>
    %cst_241 = arith.constant 1.000000e+00 : f32
    %714 = vector.broadcast %cst_241 : f32 to vector<2x32xf32>
    %715 = arith.addf %713, %714 : vector<2x32xf32>
    %cst_242 = arith.constant 5.000000e-01 : f32
    %716 = vector.broadcast %cst_242 : f32 to vector<2x32xf32>
    %717 = arith.mulf %716, %715 : vector<2x32xf32>
    %718 = vector.extract_strided_slice %709 {offsets = [0, 32], sizes = [2, 32], strides = [1, 1]} : vector<2x128xf32> to vector<2x32xf32>
    %cst_243 = arith.constant 5.000000e-01 : f32
    %719 = vector.broadcast %cst_243 : f32 to vector<2x32xf32>
    %720 = arith.mulf %719, %718 : vector<2x32xf32>
    %721 = math.tanh %720 : vector<2x32xf32>
    %cst_244 = arith.constant 1.000000e+00 : f32
    %722 = vector.broadcast %cst_244 : f32 to vector<2x32xf32>
    %723 = arith.addf %721, %722 : vector<2x32xf32>
    %cst_245 = arith.constant 5.000000e-01 : f32
    %724 = vector.broadcast %cst_245 : f32 to vector<2x32xf32>
    %725 = arith.mulf %724, %723 : vector<2x32xf32>
    %726 = vector.extract_strided_slice %709 {offsets = [0, 64], sizes = [2, 32], strides = [1, 1]} : vector<2x128xf32> to vector<2x32xf32>
    %727 = math.tanh %726 : vector<2x32xf32>
    %728 = vector.extract_strided_slice %709 {offsets = [0, 96], sizes = [2, 32], strides = [1, 1]} : vector<2x128xf32> to vector<2x32xf32>
    %cst_246 = arith.constant 5.000000e-01 : f32
    %729 = vector.broadcast %cst_246 : f32 to vector<2x32xf32>
    %730 = arith.mulf %729, %728 : vector<2x32xf32>
    %731 = math.tanh %730 : vector<2x32xf32>
    %cst_247 = arith.constant 1.000000e+00 : f32
    %732 = vector.broadcast %cst_247 : f32 to vector<2x32xf32>
    %733 = arith.addf %731, %732 : vector<2x32xf32>
    %cst_248 = arith.constant 5.000000e-01 : f32
    %734 = vector.broadcast %cst_248 : f32 to vector<2x32xf32>
    %735 = arith.mulf %734, %733 : vector<2x32xf32>
    %736 = arith.mulf %725, %703 : vector<2x32xf32>
    %737 = arith.mulf %717, %727 : vector<2x32xf32>
    %738 = arith.addf %736, %737 : vector<2x32xf32>
    %739 = math.tanh %738 : vector<2x32xf32>
    %740 = arith.mulf %735, %739 : vector<2x32xf32>
    %741 = vector.extract_strided_slice %632 {offsets = [6, 0], sizes = [2, 128], strides = [1, 1]} : vector<16x128xf32> to vector<2x128xf32>
    %742 = arith.truncf %740 : vector<2x32xf32> to vector<2x32xbf16>
    %cst_249 = arith.constant dense<0.000000e+00> : vector<2x128xf32>
    %743 = tpu.matmul %742, %633, %cst_249 {dimension_numbers = #tpu.dot_dimension_numbers<[1], [0], [0], [1], [0, 0, 1, 1], [], []>} : vector<2x32xbf16>, vector<32x128xbf16>, vector<2x128xf32> -> vector<2x128xf32>
    %744 = arith.addf %741, %743 : vector<2x128xf32>
    %745 = vector.extract_strided_slice %744 {offsets = [0, 0], sizes = [2, 32], strides = [1, 1]} : vector<2x128xf32> to vector<2x32xf32>
    %cst_250 = arith.constant 5.000000e-01 : f32
    %746 = vector.broadcast %cst_250 : f32 to vector<2x32xf32>
    %747 = arith.mulf %746, %745 : vector<2x32xf32>
    %748 = math.tanh %747 : vector<2x32xf32>
    %cst_251 = arith.constant 1.000000e+00 : f32
    %749 = vector.broadcast %cst_251 : f32 to vector<2x32xf32>
    %750 = arith.addf %748, %749 : vector<2x32xf32>
    %cst_252 = arith.constant 5.000000e-01 : f32
    %751 = vector.broadcast %cst_252 : f32 to vector<2x32xf32>
    %752 = arith.mulf %751, %750 : vector<2x32xf32>
    %753 = vector.extract_strided_slice %744 {offsets = [0, 32], sizes = [2, 32], strides = [1, 1]} : vector<2x128xf32> to vector<2x32xf32>
    %cst_253 = arith.constant 5.000000e-01 : f32
    %754 = vector.broadcast %cst_253 : f32 to vector<2x32xf32>
    %755 = arith.mulf %754, %753 : vector<2x32xf32>
    %756 = math.tanh %755 : vector<2x32xf32>
    %cst_254 = arith.constant 1.000000e+00 : f32
    %757 = vector.broadcast %cst_254 : f32 to vector<2x32xf32>
    %758 = arith.addf %756, %757 : vector<2x32xf32>
    %cst_255 = arith.constant 5.000000e-01 : f32
    %759 = vector.broadcast %cst_255 : f32 to vector<2x32xf32>
    %760 = arith.mulf %759, %758 : vector<2x32xf32>
    %761 = vector.extract_strided_slice %744 {offsets = [0, 64], sizes = [2, 32], strides = [1, 1]} : vector<2x128xf32> to vector<2x32xf32>
    %762 = math.tanh %761 : vector<2x32xf32>
    %763 = vector.extract_strided_slice %744 {offsets = [0, 96], sizes = [2, 32], strides = [1, 1]} : vector<2x128xf32> to vector<2x32xf32>
    %cst_256 = arith.constant 5.000000e-01 : f32
    %764 = vector.broadcast %cst_256 : f32 to vector<2x32xf32>
    %765 = arith.mulf %764, %763 : vector<2x32xf32>
    %766 = math.tanh %765 : vector<2x32xf32>
    %cst_257 = arith.constant 1.000000e+00 : f32
    %767 = vector.broadcast %cst_257 : f32 to vector<2x32xf32>
    %768 = arith.addf %766, %767 : vector<2x32xf32>
    %cst_258 = arith.constant 5.000000e-01 : f32
    %769 = vector.broadcast %cst_258 : f32 to vector<2x32xf32>
    %770 = arith.mulf %769, %768 : vector<2x32xf32>
    %771 = arith.mulf %760, %738 : vector<2x32xf32>
    %772 = arith.mulf %752, %762 : vector<2x32xf32>
    %773 = arith.addf %771, %772 : vector<2x32xf32>
    %774 = math.tanh %773 : vector<2x32xf32>
    %775 = arith.mulf %770, %774 : vector<2x32xf32>
    %776 = vector.extract_strided_slice %632 {offsets = [8, 0], sizes = [2, 128], strides = [1, 1]} : vector<16x128xf32> to vector<2x128xf32>
    %777 = arith.truncf %775 : vector<2x32xf32> to vector<2x32xbf16>
    %cst_259 = arith.constant dense<0.000000e+00> : vector<2x128xf32>
    %778 = tpu.matmul %777, %633, %cst_259 {dimension_numbers = #tpu.dot_dimension_numbers<[1], [0], [0], [1], [0, 0, 1, 1], [], []>} : vector<2x32xbf16>, vector<32x128xbf16>, vector<2x128xf32> -> vector<2x128xf32>
    %779 = arith.addf %776, %778 : vector<2x128xf32>
    %780 = vector.extract_strided_slice %779 {offsets = [0, 0], sizes = [2, 32], strides = [1, 1]} : vector<2x128xf32> to vector<2x32xf32>
    %cst_260 = arith.constant 5.000000e-01 : f32
    %781 = vector.broadcast %cst_260 : f32 to vector<2x32xf32>
    %782 = arith.mulf %781, %780 : vector<2x32xf32>
    %783 = math.tanh %782 : vector<2x32xf32>
    %cst_261 = arith.constant 1.000000e+00 : f32
    %784 = vector.broadcast %cst_261 : f32 to vector<2x32xf32>
    %785 = arith.addf %783, %784 : vector<2x32xf32>
    %cst_262 = arith.constant 5.000000e-01 : f32
    %786 = vector.broadcast %cst_262 : f32 to vector<2x32xf32>
    %787 = arith.mulf %786, %785 : vector<2x32xf32>
    %788 = vector.extract_strided_slice %779 {offsets = [0, 32], sizes = [2, 32], strides = [1, 1]} : vector<2x128xf32> to vector<2x32xf32>
    %cst_263 = arith.constant 5.000000e-01 : f32
    %789 = vector.broadcast %cst_263 : f32 to vector<2x32xf32>
    %790 = arith.mulf %789, %788 : vector<2x32xf32>
    %791 = math.tanh %790 : vector<2x32xf32>
    %cst_264 = arith.constant 1.000000e+00 : f32
    %792 = vector.broadcast %cst_264 : f32 to vector<2x32xf32>
    %793 = arith.addf %791, %792 : vector<2x32xf32>
    %cst_265 = arith.constant 5.000000e-01 : f32
    %794 = vector.broadcast %cst_265 : f32 to vector<2x32xf32>
    %795 = arith.mulf %794, %793 : vector<2x32xf32>
    %796 = vector.extract_strided_slice %779 {offsets = [0, 64], sizes = [2, 32], strides = [1, 1]} : vector<2x128xf32> to vector<2x32xf32>
    %797 = math.tanh %796 : vector<2x32xf32>
    %798 = vector.extract_strided_slice %779 {offsets = [0, 96], sizes = [2, 32], strides = [1, 1]} : vector<2x128xf32> to vector<2x32xf32>
    %cst_266 = arith.constant 5.000000e-01 : f32
    %799 = vector.broadcast %cst_266 : f32 to vector<2x32xf32>
    %800 = arith.mulf %799, %798 : vector<2x32xf32>
    %801 = math.tanh %800 : vector<2x32xf32>
    %cst_267 = arith.constant 1.000000e+00 : f32
    %802 = vector.broadcast %cst_267 : f32 to vector<2x32xf32>
    %803 = arith.addf %801, %802 : vector<2x32xf32>
    %cst_268 = arith.constant 5.000000e-01 : f32
    %804 = vector.broadcast %cst_268 : f32 to vector<2x32xf32>
    %805 = arith.mulf %804, %803 : vector<2x32xf32>
    %806 = arith.mulf %795, %773 : vector<2x32xf32>
    %807 = arith.mulf %787, %797 : vector<2x32xf32>
    %808 = arith.addf %806, %807 : vector<2x32xf32>
    %809 = math.tanh %808 : vector<2x32xf32>
    %810 = arith.mulf %805, %809 : vector<2x32xf32>
    %811 = vector.extract_strided_slice %632 {offsets = [10, 0], sizes = [2, 128], strides = [1, 1]} : vector<16x128xf32> to vector<2x128xf32>
    %812 = arith.truncf %810 : vector<2x32xf32> to vector<2x32xbf16>
    %cst_269 = arith.constant dense<0.000000e+00> : vector<2x128xf32>
    %813 = tpu.matmul %812, %633, %cst_269 {dimension_numbers = #tpu.dot_dimension_numbers<[1], [0], [0], [1], [0, 0, 1, 1], [], []>} : vector<2x32xbf16>, vector<32x128xbf16>, vector<2x128xf32> -> vector<2x128xf32>
    %814 = arith.addf %811, %813 : vector<2x128xf32>
    %815 = vector.extract_strided_slice %814 {offsets = [0, 0], sizes = [2, 32], strides = [1, 1]} : vector<2x128xf32> to vector<2x32xf32>
    %cst_270 = arith.constant 5.000000e-01 : f32
    %816 = vector.broadcast %cst_270 : f32 to vector<2x32xf32>
    %817 = arith.mulf %816, %815 : vector<2x32xf32>
    %818 = math.tanh %817 : vector<2x32xf32>
    %cst_271 = arith.constant 1.000000e+00 : f32
    %819 = vector.broadcast %cst_271 : f32 to vector<2x32xf32>
    %820 = arith.addf %818, %819 : vector<2x32xf32>
    %cst_272 = arith.constant 5.000000e-01 : f32
    %821 = vector.broadcast %cst_272 : f32 to vector<2x32xf32>
    %822 = arith.mulf %821, %820 : vector<2x32xf32>
    %823 = vector.extract_strided_slice %814 {offsets = [0, 32], sizes = [2, 32], strides = [1, 1]} : vector<2x128xf32> to vector<2x32xf32>
    %cst_273 = arith.constant 5.000000e-01 : f32
    %824 = vector.broadcast %cst_273 : f32 to vector<2x32xf32>
    %825 = arith.mulf %824, %823 : vector<2x32xf32>
    %826 = math.tanh %825 : vector<2x32xf32>
    %cst_274 = arith.constant 1.000000e+00 : f32
    %827 = vector.broadcast %cst_274 : f32 to vector<2x32xf32>
    %828 = arith.addf %826, %827 : vector<2x32xf32>
    %cst_275 = arith.constant 5.000000e-01 : f32
    %829 = vector.broadcast %cst_275 : f32 to vector<2x32xf32>
    %830 = arith.mulf %829, %828 : vector<2x32xf32>
    %831 = vector.extract_strided_slice %814 {offsets = [0, 64], sizes = [2, 32], strides = [1, 1]} : vector<2x128xf32> to vector<2x32xf32>
    %832 = math.tanh %831 : vector<2x32xf32>
    %833 = vector.extract_strided_slice %814 {offsets = [0, 96], sizes = [2, 32], strides = [1, 1]} : vector<2x128xf32> to vector<2x32xf32>
    %cst_276 = arith.constant 5.000000e-01 : f32
    %834 = vector.broadcast %cst_276 : f32 to vector<2x32xf32>
    %835 = arith.mulf %834, %833 : vector<2x32xf32>
    %836 = math.tanh %835 : vector<2x32xf32>
    %cst_277 = arith.constant 1.000000e+00 : f32
    %837 = vector.broadcast %cst_277 : f32 to vector<2x32xf32>
    %838 = arith.addf %836, %837 : vector<2x32xf32>
    %cst_278 = arith.constant 5.000000e-01 : f32
    %839 = vector.broadcast %cst_278 : f32 to vector<2x32xf32>
    %840 = arith.mulf %839, %838 : vector<2x32xf32>
    %841 = arith.mulf %830, %808 : vector<2x32xf32>
    %842 = arith.mulf %822, %832 : vector<2x32xf32>
    %843 = arith.addf %841, %842 : vector<2x32xf32>
    %844 = math.tanh %843 : vector<2x32xf32>
    %845 = arith.mulf %840, %844 : vector<2x32xf32>
    %846 = vector.extract_strided_slice %632 {offsets = [12, 0], sizes = [2, 128], strides = [1, 1]} : vector<16x128xf32> to vector<2x128xf32>
    %847 = arith.truncf %845 : vector<2x32xf32> to vector<2x32xbf16>
    %cst_279 = arith.constant dense<0.000000e+00> : vector<2x128xf32>
    %848 = tpu.matmul %847, %633, %cst_279 {dimension_numbers = #tpu.dot_dimension_numbers<[1], [0], [0], [1], [0, 0, 1, 1], [], []>} : vector<2x32xbf16>, vector<32x128xbf16>, vector<2x128xf32> -> vector<2x128xf32>
    %849 = arith.addf %846, %848 : vector<2x128xf32>
    %850 = vector.extract_strided_slice %849 {offsets = [0, 0], sizes = [2, 32], strides = [1, 1]} : vector<2x128xf32> to vector<2x32xf32>
    %cst_280 = arith.constant 5.000000e-01 : f32
    %851 = vector.broadcast %cst_280 : f32 to vector<2x32xf32>
    %852 = arith.mulf %851, %850 : vector<2x32xf32>
    %853 = math.tanh %852 : vector<2x32xf32>
    %cst_281 = arith.constant 1.000000e+00 : f32
    %854 = vector.broadcast %cst_281 : f32 to vector<2x32xf32>
    %855 = arith.addf %853, %854 : vector<2x32xf32>
    %cst_282 = arith.constant 5.000000e-01 : f32
    %856 = vector.broadcast %cst_282 : f32 to vector<2x32xf32>
    %857 = arith.mulf %856, %855 : vector<2x32xf32>
    %858 = vector.extract_strided_slice %849 {offsets = [0, 32], sizes = [2, 32], strides = [1, 1]} : vector<2x128xf32> to vector<2x32xf32>
    %cst_283 = arith.constant 5.000000e-01 : f32
    %859 = vector.broadcast %cst_283 : f32 to vector<2x32xf32>
    %860 = arith.mulf %859, %858 : vector<2x32xf32>
    %861 = math.tanh %860 : vector<2x32xf32>
    %cst_284 = arith.constant 1.000000e+00 : f32
    %862 = vector.broadcast %cst_284 : f32 to vector<2x32xf32>
    %863 = arith.addf %861, %862 : vector<2x32xf32>
    %cst_285 = arith.constant 5.000000e-01 : f32
    %864 = vector.broadcast %cst_285 : f32 to vector<2x32xf32>
    %865 = arith.mulf %864, %863 : vector<2x32xf32>
    %866 = vector.extract_strided_slice %849 {offsets = [0, 64], sizes = [2, 32], strides = [1, 1]} : vector<2x128xf32> to vector<2x32xf32>
    %867 = math.tanh %866 : vector<2x32xf32>
    %868 = vector.extract_strided_slice %849 {offsets = [0, 96], sizes = [2, 32], strides = [1, 1]} : vector<2x128xf32> to vector<2x32xf32>
    %cst_286 = arith.constant 5.000000e-01 : f32
    %869 = vector.broadcast %cst_286 : f32 to vector<2x32xf32>
    %870 = arith.mulf %869, %868 : vector<2x32xf32>
    %871 = math.tanh %870 : vector<2x32xf32>
    %cst_287 = arith.constant 1.000000e+00 : f32
    %872 = vector.broadcast %cst_287 : f32 to vector<2x32xf32>
    %873 = arith.addf %871, %872 : vector<2x32xf32>
    %cst_288 = arith.constant 5.000000e-01 : f32
    %874 = vector.broadcast %cst_288 : f32 to vector<2x32xf32>
    %875 = arith.mulf %874, %873 : vector<2x32xf32>
    %876 = arith.mulf %865, %843 : vector<2x32xf32>
    %877 = arith.mulf %857, %867 : vector<2x32xf32>
    %878 = arith.addf %876, %877 : vector<2x32xf32>
    %879 = math.tanh %878 : vector<2x32xf32>
    %880 = arith.mulf %875, %879 : vector<2x32xf32>
    %881 = vector.extract_strided_slice %632 {offsets = [14, 0], sizes = [2, 128], strides = [1, 1]} : vector<16x128xf32> to vector<2x128xf32>
    %882 = arith.truncf %880 : vector<2x32xf32> to vector<2x32xbf16>
    %cst_289 = arith.constant dense<0.000000e+00> : vector<2x128xf32>
    %883 = tpu.matmul %882, %633, %cst_289 {dimension_numbers = #tpu.dot_dimension_numbers<[1], [0], [0], [1], [0, 0, 1, 1], [], []>} : vector<2x32xbf16>, vector<32x128xbf16>, vector<2x128xf32> -> vector<2x128xf32>
    %884 = arith.addf %881, %883 : vector<2x128xf32>
    %885 = vector.extract_strided_slice %884 {offsets = [0, 0], sizes = [2, 32], strides = [1, 1]} : vector<2x128xf32> to vector<2x32xf32>
    %cst_290 = arith.constant 5.000000e-01 : f32
    %886 = vector.broadcast %cst_290 : f32 to vector<2x32xf32>
    %887 = arith.mulf %886, %885 : vector<2x32xf32>
    %888 = math.tanh %887 : vector<2x32xf32>
    %cst_291 = arith.constant 1.000000e+00 : f32
    %889 = vector.broadcast %cst_291 : f32 to vector<2x32xf32>
    %890 = arith.addf %888, %889 : vector<2x32xf32>
    %cst_292 = arith.constant 5.000000e-01 : f32
    %891 = vector.broadcast %cst_292 : f32 to vector<2x32xf32>
    %892 = arith.mulf %891, %890 : vector<2x32xf32>
    %893 = vector.extract_strided_slice %884 {offsets = [0, 32], sizes = [2, 32], strides = [1, 1]} : vector<2x128xf32> to vector<2x32xf32>
    %cst_293 = arith.constant 5.000000e-01 : f32
    %894 = vector.broadcast %cst_293 : f32 to vector<2x32xf32>
    %895 = arith.mulf %894, %893 : vector<2x32xf32>
    %896 = math.tanh %895 : vector<2x32xf32>
    %cst_294 = arith.constant 1.000000e+00 : f32
    %897 = vector.broadcast %cst_294 : f32 to vector<2x32xf32>
    %898 = arith.addf %896, %897 : vector<2x32xf32>
    %cst_295 = arith.constant 5.000000e-01 : f32
    %899 = vector.broadcast %cst_295 : f32 to vector<2x32xf32>
    %900 = arith.mulf %899, %898 : vector<2x32xf32>
    %901 = vector.extract_strided_slice %884 {offsets = [0, 64], sizes = [2, 32], strides = [1, 1]} : vector<2x128xf32> to vector<2x32xf32>
    %902 = math.tanh %901 : vector<2x32xf32>
    %903 = vector.extract_strided_slice %884 {offsets = [0, 96], sizes = [2, 32], strides = [1, 1]} : vector<2x128xf32> to vector<2x32xf32>
    %cst_296 = arith.constant 5.000000e-01 : f32
    %904 = vector.broadcast %cst_296 : f32 to vector<2x32xf32>
    %905 = arith.mulf %904, %903 : vector<2x32xf32>
    %906 = math.tanh %905 : vector<2x32xf32>
    %cst_297 = arith.constant 1.000000e+00 : f32
    %907 = vector.broadcast %cst_297 : f32 to vector<2x32xf32>
    %908 = arith.addf %906, %907 : vector<2x32xf32>
    %cst_298 = arith.constant 5.000000e-01 : f32
    %909 = vector.broadcast %cst_298 : f32 to vector<2x32xf32>
    %910 = arith.mulf %909, %908 : vector<2x32xf32>
    %911 = arith.mulf %900, %878 : vector<2x32xf32>
    %912 = arith.mulf %892, %902 : vector<2x32xf32>
    %913 = arith.addf %911, %912 : vector<2x32xf32>
    %914 = math.tanh %913 : vector<2x32xf32>
    %915 = arith.mulf %910, %914 : vector<2x32xf32>
    %c0_299 = arith.constant 0 : index
    %c0_300 = arith.constant 0 : index
    %916 = vector.load %arg11[%c0_299, %c0_300] : memref<2x32xf32, #tpu.memory_space<vmem>>, vector<2x32xf32>
    tpu.vector_store %arg11[%c0_299, %c0_300], %915 {strides = array<i32>} : memref<2x32xf32, #tpu.memory_space<vmem>>, vector<2x32xf32>,
    return
  }
}

</mosaic_0001>

<llo_original>
// kernel: tpu_custom_call.1
$region0: #{tpu_custom_call.1}
  #allocation0 [shape = 'u32[]', space=smem, size = 0x4, offset = 0x4, fixed_abs, tag = 'smem constant byte address 0x4 - core index']
  #allocation1 [shape = 'u32[72,128]{1,0:T(1,128)}', space=vmem, size = 0x9000, scoped, tag = 'internal scratch']
  #allocation2 [shape = 'f32[16,16]{1,0:T(8,128)}', space=vmem, size = 0x2000, scoped, tag = 'scratch operand']
  #allocation3 [shape = 'f32[16,16]{1,0:T(8,128)}', space=vmem, size = 0x2000, scoped, tag = 'scratch operand']
  %s0 = inlined_call_operand.hbm [shape: bf16[16,24], index: 0, kind: input, shape index: {}]
  %s1 = inlined_call_operand.hbm [shape: bf16[24,64], index: 1, kind: input, shape index: {}]
  %s2 = inlined_call_operand.hbm [shape: bf16[24,64], index: 2, kind: input, shape index: {}]
  %s3 = inlined_call_operand.hbm [shape: bf16[16,64], index: 3, kind: input, shape index: {}]
  %s4 = inlined_call_operand.hbm [shape: bf16[16,64], index: 4, kind: input, shape index: {}]
  %s5 = inlined_call_operand.vmem [shape: f32[1,64], index: 5, kind: input, shape index: {}]
  %s6 = inlined_call_operand.vmem [shape: f32[1,64], index: 6, kind: input, shape index: {}]
  %s7 = inlined_call_operand.hbm [shape: bf16[16,128], index: 7, kind: input, shape index: {}]
  %s8 = inlined_call_operand.hbm [shape: bf16[16,128], index: 8, kind: input, shape index: {}]
  %s9 = inlined_call_operand.hbm [shape: bf16[32,128], index: 9, kind: input, shape index: {}]
  %s10 = inlined_call_operand.vmem [shape: f32[1,128], index: 10, kind: input, shape index: {}]
  %s11 = inlined_call_operand.hbm [shape: f32[2,32], index: 11, kind: output, shape index: {}]
  %s12 = sld [smem:[#allocation0]]
  $region86: #{tpu_custom_call.1} parent=0
    _
  %s14 = ssub.s32 1, %s12
  %s15 = scalar_select 0, %s14, %s12
  $region1: #{tpu_custom_call.1} parent=0
    #allocation4 [shape = 'u8[4096]{0}', space=vmem, size = 0x1000, scoped, tag = 'input window, operand 0, single buffered']
    #allocation5 [shape = 's32[1]{0}', space=sflag, size = 0x4, scoped, tag = 'scoped memory for tpu_custom_call.1']
    #allocation6 [shape = 's32[1]{0}', space=sflag, size = 0x4, scoped, tag = 'scoped memory for tpu_custom_call.1']
    #allocation7 [shape = 'u8[6144]{0}', space=vmem, size = 0x1800, scoped, tag = 'input window, operand 1, single buffered']
    #allocation8 [shape = 's32[1]{0}', space=sflag, size = 0x4, scoped, tag = 'scoped memory for tpu_custom_call.1']
    #allocation9 [shape = 'u8[6144]{0}', space=vmem, size = 0x1800, scoped, tag = 'input window, operand 2, single buffered']
    #allocation10 [shape = 'u8[4096]{0}', space=vmem, size = 0x1000, scoped, tag = 'input window, operand 3, single buffered']
    #allocation11 [shape = 's32[1]{0}', space=sflag, size = 0x4, scoped, tag = 'scoped memory for tpu_custom_call.1']
    #allocation12 [shape = 'u8[4096]{0}', space=vmem, size = 0x1000, scoped, tag = 'input window, operand 4, single buffered']
    #allocation13 [shape = 'u8[4096]{0}', space=vmem, size = 0x1000, scoped, tag = 'input window, operand 7, single buffered']
    #allocation14 [shape = 's32[1]{0}', space=sflag, size = 0x4, scoped, tag = 'scoped memory for tpu_custom_call.1']
    #allocation15 [shape = 'u8[4096]{0}', space=vmem, size = 0x1000, scoped, tag = 'input window, operand 8, single buffered']
    #allocation16 [shape = 'u8[8192]{0}', space=vmem, size = 0x2000, scoped, tag = 'input window, operand 9, single buffered']
    #allocation17 [shape = 's32[1]{0}', space=sflag, size = 0x4, scoped, tag = 'scoped memory for tpu_custom_call.1']
    #allocation18 [shape = 'u8[1024]{0}', space=vmem, size = 0x400, scoped, tag = 'output window, operand 0, single buffered']
    %16 = vsyncpa [#allocation5], 0
    %17 = vsyncpa [#allocation8], 0
    %18 = vsyncpa [#allocation11], 0
    %19 = vsyncpa [#allocation14], 0
    %20 = vsyncpa [#allocation17], 0
    %21 = vsyncpa [#allocation6], 0
    // Predicated region
    $region2: #{tpu_custom_call.1} parent=1 // pred_check
      _
    $region3: #{tpu_custom_call.1} parent=1 // pred_check_branch
      %23 = sbr.rel (0) target = $region5
    $region4: #{tpu_custom_call.1} parent=1 // pred_region
      %25 = vsyncadd [#allocation5], 0
      %s26 = sshll.u32 %s0, 4
      %s27 = int_to_ptr.hbm [resolvable:$true] %s26
      %s28 = sshll.u32 [#allocation4], 4
      %s29 = int_to_ptr.vmem [resolvable:$true] %s28
      %34 = dma.hbm_to_vmem [thread:$0]  %s27, 128, %s29, [#allocation5], 64, 64, 4
    $region5: #{tpu_custom_call.1} parent=1 // pred_fallthru
      _
    // Predicated region
    $region6: #{tpu_custom_call.1} parent=1 // pred_check
      _
    $region7: #{tpu_custom_call.1} parent=1 // pred_check_branch
      %36 = sbr.rel (0) target = $region9
    $region8: #{tpu_custom_call.1} parent=1 // pred_region
      %38 = vsyncadd [#allocation8], 0
      %s39 = sshll.u32 %s1, 4
      %s40 = int_to_ptr.hbm [resolvable:$true] %s39
      %s41 = sshll.u32 [#allocation7], 4
      %s42 = int_to_ptr.vmem [resolvable:$true] %s41
      %47 = dma.hbm_to_vmem [thread:$0]  %s40, 192, %s42, [#allocation8], 64, 64, 4
    $region9: #{tpu_custom_call.1} parent=1 // pred_fallthru
      _
    // Predicated region
    $region10: #{tpu_custom_call.1} parent=1 // pred_check
      _
    $region11: #{tpu_custom_call.1} parent=1 // pred_check_branch
      %49 = sbr.rel (0) target = $region13
    $region12: #{tpu_custom_call.1} parent=1 // pred_region
      %51 = vsyncadd [#allocation8], 0
      %s52 = sshll.u32 %s2, 4
      %s53 = int_to_ptr.hbm [resolvable:$true] %s52
      %s54 = sshll.u32 [#allocation9], 4
      %s55 = int_to_ptr.vmem [resolvable:$true] %s54
      %60 = dma.hbm_to_vmem [thread:$0]  %s53, 192, %s55, [#allocation8], 64, 64, 4
    $region13: #{tpu_custom_call.1} parent=1 // pred_fallthru
      _
    // Predicated region
    $region14: #{tpu_custom_call.1} parent=1 // pred_check
      _
    $region15: #{tpu_custom_call.1} parent=1 // pred_check_branch
      %62 = sbr.rel (0) target = $region17
    $region16: #{tpu_custom_call.1} parent=1 // pred_region
      %64 = vsyncadd [#allocation11], 0
      %s65 = sshll.u32 %s3, 4
      %s66 = int_to_ptr.hbm [resolvable:$true] %s65
      %s67 = sshll.u32 [#allocation10], 4
      %s68 = int_to_ptr.vmem [resolvable:$true] %s67
      %73 = dma.hbm_to_vmem [thread:$0]  %s66, 128, %s68, [#allocation11], 64, 64, 4
    $region17: #{tpu_custom_call.1} parent=1 // pred_fallthru
      _
    // Predicated region
    $region18: #{tpu_custom_call.1} parent=1 // pred_check
      _
    $region19: #{tpu_custom_call.1} parent=1 // pred_check_branch
      %75 = sbr.rel (0) target = $region21
    $region20: #{tpu_custom_call.1} parent=1 // pred_region
      %77 = vsyncadd [#allocation11], 0
      %s78 = sshll.u32 %s4, 4
      %s79 = int_to_ptr.hbm [resolvable:$true] %s78
      %s80 = sshll.u32 [#allocation12], 4
      %s81 = int_to_ptr.vmem [resolvable:$true] %s80
      %86 = dma.hbm_to_vmem [thread:$0]  %s79, 128, %s81, [#allocation11], 64, 64, 4
    $region21: #{tpu_custom_call.1} parent=1 // pred_fallthru
      _
    // Predicated region
    $region22: #{tpu_custom_call.1} parent=1 // pred_check
      _
    $region23: #{tpu_custom_call.1} parent=1 // pred_check_branch
      %88 = sbr.rel (0) target = $region25
    $region24: #{tpu_custom_call.1} parent=1 // pred_region
      _
    $region25: #{tpu_custom_call.1} parent=1 // pred_fallthru
      _
    // Predicated region
    $region26: #{tpu_custom_call.1} parent=1 // pred_check
      _
    $region27: #{tpu_custom_call.1} parent=1 // pred_check_branch
      %90 = sbr.rel (0) target = $region29
    $region28: #{tpu_custom_call.1} parent=1 // pred_region
      _
    $region29: #{tpu_custom_call.1} parent=1 // pred_fallthru
      _
    // Predicated region
    $region30: #{tpu_custom_call.1} parent=1 // pred_check
      _
    $region31: #{tpu_custom_call.1} parent=1 // pred_check_branch
      %92 = sbr.rel (0) target = $region33
    $region32: #{tpu_custom_call.1} parent=1 // pred_region
      %94 = vsyncadd [#allocation14], 0
      %s95 = sshll.u32 %s7, 4
      %s96 = int_to_ptr.hbm [resolvable:$true] %s95
      %s97 = sshll.u32 [#allocation13], 4
      %s98 = int_to_ptr.vmem [resolvable:$true] %s97
      %103 = dma.hbm_to_vmem [thread:$0]  %s96, 128, %s98, [#allocation14], 64, 64, 4
    $region33: #{tpu_custom_call.1} parent=1 // pred_fallthru
      _
    // Predicated region
    $region34: #{tpu_custom_call.1} parent=1 // pred_check
      _
    $region35: #{tpu_custom_call.1} parent=1 // pred_check_branch
      %105 = sbr.rel (0) target = $region37
    $region36: #{tpu_custom_call.1} parent=1 // pred_region
      %107 = vsyncadd [#allocation14], 0
      %s108 = sshll.u32 %s8, 4
      %s109 = int_to_ptr.hbm [resolvable:$true] %s108
      %s110 = sshll.u32 [#allocation15], 4
      %s111 = int_to_ptr.vmem [resolvable:$true] %s110
      %116 = dma.hbm_to_vmem [thread:$0]  %s109, 128, %s111, [#allocation14], 64, 64, 4
    $region37: #{tpu_custom_call.1} parent=1 // pred_fallthru
      _
    // Predicated region
    $region38: #{tpu_custom_call.1} parent=1 // pred_check
      _
    $region39: #{tpu_custom_call.1} parent=1 // pred_check_branch
      %118 = sbr.rel (0) target = $region41
    $region40: #{tpu_custom_call.1} parent=1 // pred_region
      %120 = vsyncadd [#allocation17], 0
      %s121 = sshll.u32 %s9, 4
      %s122 = int_to_ptr.hbm [resolvable:$true] %s121
      %s123 = sshll.u32 [#allocation16], 4
      %s124 = int_to_ptr.vmem [resolvable:$true] %s123
      %129 = dma.hbm_to_vmem [thread:$0]  %s122, 256, %s124, [#allocation17], 64, 64, 4
    $region41: #{tpu_custom_call.1} parent=1 // pred_fallthru
      _
    // Predicated region
    $region42: #{tpu_custom_call.1} parent=1 // pred_check
      _
    $region43: #{tpu_custom_call.1} parent=1 // pred_check_branch
      %131 = sbr.rel (0) target = $region45
    $region44: #{tpu_custom_call.1} parent=1 // pred_region
      _
    $region45: #{tpu_custom_call.1} parent=1 // pred_fallthru
      _
    // Predicated region
    $region46: #{tpu_custom_call.1} parent=1 // pred_check
      _
    $region47: #{tpu_custom_call.1} parent=1 // pred_check_branch
      %133 = sbr.rel (0) target = $region49
    $region48: #{tpu_custom_call.1} parent=1 // pred_region
      %135 = dma.done [#allocation5], 128
    $region49: #{tpu_custom_call.1} parent=1 // pred_fallthru
      _
    // Predicated region
    $region50: #{tpu_custom_call.1} parent=1 // pred_check
      _
    $region51: #{tpu_custom_call.1} parent=1 // pred_check_branch
      %137 = sbr.rel (0) target = $region53
    $region52: #{tpu_custom_call.1} parent=1 // pred_region
      %139 = dma.done [#allocation8], 192
    $region53: #{tpu_custom_call.1} parent=1 // pred_fallthru
      _
    // Predicated region
    $region54: #{tpu_custom_call.1} parent=1 // pred_check
      _
    $region55: #{tpu_custom_call.1} parent=1 // pred_check_branch
      %141 = sbr.rel (0) target = $region57
    $region56: #{tpu_custom_call.1} parent=1 // pred_region
      %143 = dma.done [#allocation8], 192
    $region57: #{tpu_custom_call.1} parent=1 // pred_fallthru
      _
    // Predicated region
    $region58: #{tpu_custom_call.1} parent=1 // pred_check
      _
    $region59: #{tpu_custom_call.1} parent=1 // pred_check_branch
      %145 = sbr.rel (0) target = $region61
    $region60: #{tpu_custom_call.1} parent=1 // pred_region
      %147 = dma.done [#allocation11], 128
    $region61: #{tpu_custom_call.1} parent=1 // pred_fallthru
      _
    // Predicated region
    $region62: #{tpu_custom_call.1} parent=1 // pred_check
      _
    $region63: #{tpu_custom_call.1} parent=1 // pred_check_branch
      %149 = sbr.rel (0) target = $region65
    $region64: #{tpu_custom_call.1} parent=1 // pred_region
      %151 = dma.done [#allocation11], 128
    $region65: #{tpu_custom_call.1} parent=1 // pred_fallthru
      _
    // Predicated region
    $region66: #{tpu_custom_call.1} parent=1 // pred_check
      _
    $region67: #{tpu_custom_call.1} parent=1 // pred_check_branch
      %153 = sbr.rel (0) target = $region69
    $region68: #{tpu_custom_call.1} parent=1 // pred_region
      %155 = dma.done [#allocation14], 128
    $region69: #{tpu_custom_call.1} parent=1 // pred_fallthru
      _
    // Predicated region
    $region70: #{tpu_custom_call.1} parent=1 // pred_check
      _
    $region71: #{tpu_custom_call.1} parent=1 // pred_check_branch
      %157 = sbr.rel (0) target = $region73
    $region72: #{tpu_custom_call.1} parent=1 // pred_region
      %159 = dma.done [#allocation14], 128
    $region73: #{tpu_custom_call.1} parent=1 // pred_fallthru
      _
    // Predicated region
    $region74: #{tpu_custom_call.1} parent=1 // pred_check
      _
    $region75: #{tpu_custom_call.1} parent=1 // pred_check_branch
      %161 = sbr.rel (0) target = $region77
    $region76: #{tpu_custom_call.1} parent=1 // pred_region
      %163 = dma.done [#allocation17], 256
    $region77: #{tpu_custom_call.1} parent=1 // pred_fallthru
      _
    %v165 = vld [vmem:[#allocation4] sm:$0xf]
    %v166 = vld [vmem:[#allocation4 + $0x4] sm:$0xf]
    %v167 = vld [vmem:[#allocation10] sm:$0xf]
    %v168 = vld [vmem:[#allocation10 + $0x4] sm:$0xf]
    %v169 = vld [vmem:[#allocation12] sm:$0xf]
    %v170 = vld [vmem:[#allocation12 + $0x4] sm:$0xf]
    %v171 = vld [vmem:[%s5] sm:$0x1]
    %v172 = vld [vmem:[%s6] sm:$0x1]
    %v173 = vld [vmem:[#allocation7] sm:$0xf]
    %v174 = vld [vmem:[#allocation7 + $0x4] sm:$0xf]
    %v175 = vld [vmem:[#allocation7 + $0x8] sm:$0xf]
    %v178 = vunpack.c.l.b16 %v165
    %v179 = vunpack.c.l.b16 %v166
    %v180 = vpack.c.b16 %v179, %v178
    %v184 = vunpack.c.l.b16 %v173
    %v185 = vunpack.c.l.b16 %v174
    %v186 = vunpack.c.l.b16 %v175
    %v187 = vpack.c.b16 %v185, %v184
    %v188 = vpack.c.b16 %v186, %v186
    %vm190 = vcmask 195584
    %v192 = vsel %vm190, %v180, 0
    %vm194 = vcmask 1043456
    %v196 = vsel %vm194, %v188, 0
    %198 = vmatpush.bf16.msra.mxu0 0
    %199 = vmatpush.bf16.msra.mxu0 0
    %200 = vmatpush.bf16.msra.mxu0 0
    %201 = vmatpush.bf16.msra.mxu0 0
    %202 = vmatpush.bf16.msra.mxu0 0
    %203 = vmatpush.bf16.msra.mxu0 0
    %204 = vmatpush.bf16.msra.mxu0 %v196
    %205 = vmatpush.bf16.msra.mxu0 %v187
    %206 = vmatmul.bf16.gmra.mxu0 %v192
    %v207 = vpop.f32.mrf.mxu0
    %v208 = vadd.f32 0.0, %v207
    %v209 = vpop.f32.mrf.mxu0
    %v210 = vadd.f32 0.0, %v209
    %211 = vdwg.mxu0
    %v212 = vld [vmem:[#allocation9] sm:$0xf]
    %v213 = vld [vmem:[#allocation9 + $0x4] sm:$0xf]
    %v214 = vld [vmem:[#allocation9 + $0x8] sm:$0xf]
    %v218 = vunpack.c.l.b16 %v212
    %v219 = vunpack.c.l.b16 %v213
    %v220 = vunpack.c.l.b16 %v214
    %v221 = vpack.c.b16 %v219, %v218
    %v222 = vpack.c.b16 %v220, %v220
    %v225 = vsel %vm194, %v222, 0
    %227 = vmatpush.bf16.msra.mxu0 0
    %228 = vmatpush.bf16.msra.mxu0 0
    %229 = vmatpush.bf16.msra.mxu0 0
    %230 = vmatpush.bf16.msra.mxu0 0
    %231 = vmatpush.bf16.msra.mxu0 0
    %232 = vmatpush.bf16.msra.mxu0 0
    %233 = vmatpush.bf16.msra.mxu0 %v225
    %234 = vmatpush.bf16.msra.mxu0 %v221
    %235 = vmatmul.bf16.gmra.mxu0 %v192
    %v236 = vpop.f32.mrf.mxu0
    %v237 = vadd.f32 0.0, %v236
    %v238 = vpop.f32.mrf.mxu0
    %v239 = vadd.f32 0.0, %v238
    %240 = vdwg.mxu0
    %v243 = vunpack.c.l.b16 %v169
    %v244 = vunpack.c.l.b16 %v170
    %v245 = vpack.c.b16 %v244, %v243
    %vm247 = vcmask 130048
    %v249 = vsel %vm247, 0, 0
    %251 = vmatpush.bf16.msra.mxu0 0
    %252 = vmatpush.bf16.msra.mxu0 0
    %253 = vmatpush.bf16.msra.mxu0 0
    %254 = vmatpush.bf16.msra.mxu0 0
    %255 = vmatpush.bf16.msra.mxu0 0
    %256 = vmatpush.bf16.msra.mxu0 0
    %257 = vmatpush.bf16.msra.mxu0 0
    %258 = vmatpush.bf16.msra.mxu0 %v245
    %259 = vmatmul.bf16.gmra.mxu0 %v249
    %v260 = vpop.f32.mrf.mxu0
    %v261 = vadd.f32 0.0, %v260
    %v262 = vpop.f32.mrf.mxu0
    %263 = vdwg.mxu0
    %v265 = vrot.slane %v261, 2
    %v267 = vadd.f32 %v239, %v265
    %v269 = vperm.slane %v172, 0
    %v271 = vadd.f32 %v267, %v269
    %v272 = vmul.f32 %v271, 0.5
    %v273 = vtanh.pop %v272
    %v274 = vadd.f32 %v273, 1.0
    %v275 = vmul.f32 %v274, 0.5
    %v276 = vtanh.pop %v271
    %v277 = vmul.f32 %v275, 0.0
    %279 = vrot.lane.b32.xlu0 %v276, 96
    %v280 = vpop.permute.xlu0 %279
    %v282 = vmul.f32 %v275, %v280
    %284 = vrot.lane.b32.xlu0 %v282, 16
    %v285 = vpop.permute.xlu0 %284
    %v287 = vadd.f32 %v277, %v285
    %v288 = vtanh.pop %v287
    %290 = vrot.lane.b32.xlu0 %v288, 32
    %v291 = vpop.permute.xlu0 %290
    %v293 = vmul.f32 %v275, %v291
    %295 = vrot.lane.b32.xlu0 %v293, 80
    %v296 = vpop.permute.xlu0 %295
    %vm298 = vcmask 130054
    %299 = vst.msk [vmem:[#allocation3 + $0x8] sm:$0xc0] %vm298, %v296
    %v300 = vpack.c.bf16 %v293, %v293
    %v302 = vrot.slane %v300, 3
    %303 = vrot.lane.b32.xlu0 %v302, 80
    %v304 = vpop.permute.xlu0 %303
    %v306 = vsel %vm247, %v304, 0
    %308 = vmatpush.bf16.msra.mxu0 0
    %309 = vmatpush.bf16.msra.mxu0 0
    %310 = vmatpush.bf16.msra.mxu0 0
    %311 = vmatpush.bf16.msra.mxu0 0
    %312 = vmatpush.bf16.msra.mxu0 0
    %313 = vmatpush.bf16.msra.mxu0 0
    %314 = vmatpush.bf16.msra.mxu0 0
    %315 = vmatpush.bf16.msra.mxu0 %v245
    %316 = vmatmul.bf16.gmra.mxu0 %v306
    %v317 = vpop.f32.mrf.mxu0
    %v318 = vadd.f32 0.0, %v317
    %v319 = vpop.f32.mrf.mxu0
    %320 = vdwg.mxu0
    %v322 = vrot.slane %v318, 4
    %v324 = vadd.f32 %v239, %v322
    %v325 = vadd.f32 %v324, %v269
    %v326 = vmul.f32 %v325, 0.5
    %v327 = vtanh.pop %v326
    %v328 = vadd.f32 %v327, 1.0
    %v329 = vmul.f32 %v328, 0.5
    %v330 = vtanh.pop %v325
    %v332 = vrot.slane %v287, 2
    %v334 = vmul.f32 %v329, %v332
    %336 = vrot.lane.b32.xlu0 %v330, 96
    %v337 = vpop.permute.xlu0 %336
    %v339 = vmul.f32 %v329, %v337
    %341 = vrot.lane.b32.xlu0 %v339, 16
    %v342 = vpop.permute.xlu0 %341
    %v344 = vadd.f32 %v334, %v342
    %v345 = vtanh.pop %v344
    %347 = vrot.lane.b32.xlu0 %v345, 32
    %v348 = vpop.permute.xlu0 %347
    %v350 = vmul.f32 %v329, %v348
    %352 = vrot.lane.b32.xlu0 %v350, 80
    %v353 = vpop.permute.xlu0 %352
    %vm355 = vcmask 128004
    %356 = vst.msk [vmem:[#allocation3 + $0x8] sm:$0x30] %vm355, %v353
    %v357 = vpack.c.bf16 %v350, %v350
    %v359 = vrot.slane %v357, 2
    %360 = vrot.lane.b32.xlu0 %v359, 80
    %v361 = vpop.permute.xlu0 %360
    %v363 = vsel %vm247, %v361, 0
    %365 = vmatpush.bf16.msra.mxu0 0
    %366 = vmatpush.bf16.msra.mxu0 0
    %367 = vmatpush.bf16.msra.mxu0 0
    %368 = vmatpush.bf16.msra.mxu0 0
    %369 = vmatpush.bf16.msra.mxu0 0
    %370 = vmatpush.bf16.msra.mxu0 0
    %371 = vmatpush.bf16.msra.mxu0 0
    %372 = vmatpush.bf16.msra.mxu0 %v245
    %373 = vmatmul.bf16.gmra.mxu0 %v363
    %v374 = vpop.f32.mrf.mxu0
    %v375 = vadd.f32 0.0, %v374
    %v376 = vpop.f32.mrf.mxu0
    %377 = vdwg.mxu0
    %v379 = vrot.slane %v375, 6
    %v381 = vadd.f32 %v239, %v379
    %v382 = vadd.f32 %v381, %v269
    %v383 = vmul.f32 %v382, 0.5
    %v384 = vtanh.pop %v383
    %v385 = vadd.f32 %v384, 1.0
    %v386 = vmul.f32 %v385, 0.5
    %v387 = vtanh.pop %v382
    %v389 = vrot.slane %v344, 2
    %v391 = vmul.f32 %v386, %v389
    %393 = vrot.lane.b32.xlu0 %v387, 96
    %v394 = vpop.permute.xlu0 %393
    %v396 = vmul.f32 %v386, %v394
    %398 = vrot.lane.b32.xlu0 %v396, 16
    %v399 = vpop.permute.xlu0 %398
    %v401 = vadd.f32 %v391, %v399
    %v402 = vtanh.pop %v401
    %404 = vrot.lane.b32.xlu0 %v402, 32
    %v405 = vpop.permute.xlu0 %404
    %v407 = vmul.f32 %v386, %v405
    %409 = vrot.lane.b32.xlu0 %v407, 80
    %v410 = vpop.permute.xlu0 %409
    %vm412 = vcmask 125954
    %413 = vst.msk [vmem:[#allocation3 + $0x8] sm:$0xc] %vm412, %v410
    %v414 = vpack.c.bf16 %v407, %v407
    %v416 = vrot.slane %v414, 1
    %417 = vrot.lane.b32.xlu0 %v416, 80
    %v418 = vpop.permute.xlu0 %417
    %v420 = vsel %vm247, %v418, 0
    %422 = vmatpush.bf16.msra.mxu0 0
    %423 = vmatpush.bf16.msra.mxu0 0
    %424 = vmatpush.bf16.msra.mxu0 0
    %425 = vmatpush.bf16.msra.mxu0 0
    %426 = vmatpush.bf16.msra.mxu0 0
    %427 = vmatpush.bf16.msra.mxu0 0
    %428 = vmatpush.bf16.msra.mxu0 0
    %429 = vmatpush.bf16.msra.mxu0 %v245
    %430 = vmatmul.bf16.gmra.mxu0 %v420
    %v431 = vpop.f32.mrf.mxu0
    %v432 = vadd.f32 0.0, %v431
    %v433 = vpop.f32.mrf.mxu0
    %434 = vdwg.mxu0
    %v435 = vadd.f32 %v239, %v432
    %v436 = vadd.f32 %v435, %v269
    %v437 = vmul.f32 %v436, 0.5
    %v438 = vtanh.pop %v437
    %v439 = vadd.f32 %v438, 1.0
    %v440 = vmul.f32 %v439, 0.5
    %v441 = vtanh.pop %v436
    %v443 = vrot.slane %v401, 2
    %v445 = vmul.f32 %v440, %v443
    %447 = vrot.lane.b32.xlu0 %v441, 96
    %v448 = vpop.permute.xlu0 %447
    %v450 = vmul.f32 %v440, %v448
    %452 = vrot.lane.b32.xlu0 %v450, 16
    %v453 = vpop.permute.xlu0 %452
    %v455 = vadd.f32 %v445, %v453
    %v456 = vtanh.pop %v455
    %458 = vrot.lane.b32.xlu0 %v456, 32
    %v459 = vpop.permute.xlu0 %458
    %v461 = vmul.f32 %v440, %v459
    %463 = vrot.lane.b32.xlu0 %v461, 80
    %v464 = vpop.permute.xlu0 %463
    %vm466 = vcmask 123904
    %467 = vst.msk [vmem:[#allocation3 + $0x8] sm:$0x3] %vm466, %v464
    %v468 = vpack.c.bf16 %v461, %v461
    %470 = vrot.lane.b32.xlu0 %v468, 80
    %v471 = vpop.permute.xlu0 %470
    %v473 = vsel %vm247, %v471, 0
    %475 = vmatpush.bf16.msra.mxu0 0
    %476 = vmatpush.bf16.msra.mxu0 0
    %477 = vmatpush.bf16.msra.mxu0 0
    %478 = vmatpush.bf16.msra.mxu0 0
    %479 = vmatpush.bf16.msra.mxu0 0
    %480 = vmatpush.bf16.msra.mxu0 0
    %481 = vmatpush.bf16.msra.mxu0 0
    %482 = vmatpush.bf16.msra.mxu0 %v245
    %483 = vmatmul.bf16.gmra.mxu0 %v473
    %v484 = vpop.f32.mrf.mxu0
    %v485 = vadd.f32 0.0, %v484
    %v486 = vpop.f32.mrf.mxu0
    %487 = vdwg.mxu0
    %v489 = vrot.slane %v485, 2
    %v491 = vadd.f32 %v237, %v489
    %v492 = vadd.f32 %v491, %v269
    %v493 = vmul.f32 %v492, 0.5
    %v494 = vtanh.pop %v493
    %v495 = vadd.f32 %v494, 1.0
    %v496 = vmul.f32 %v495, 0.5
    %v497 = vtanh.pop %v492
    %v499 = vrot.slane %v455, 2
    %v501 = vmul.f32 %v496, %v499
    %503 = vrot.lane.b32.xlu0 %v497, 96
    %v504 = vpop.permute.xlu0 %503
    %v506 = vmul.f32 %v496, %v504
    %508 = vrot.lane.b32.xlu0 %v506, 16
    %v509 = vpop.permute.xlu0 %508
    %v511 = vadd.f32 %v501, %v509
    %v512 = vtanh.pop %v511
    %514 = vrot.lane.b32.xlu0 %v512, 32
    %v515 = vpop.permute.xlu0 %514
    %v517 = vmul.f32 %v496, %v515
    %519 = vrot.lane.b32.xlu0 %v517, 80
    %v520 = vpop.permute.xlu0 %519
    %522 = vst.msk [vmem:[#allocation3] sm:$0xc0] %vm298, %v520
    %v523 = vpack.c.bf16 %v517, %v517
    %v525 = vrot.slane %v523, 3
    %526 = vrot.lane.b32.xlu0 %v525, 80
    %v527 = vpop.permute.xlu0 %526
    %v529 = vsel %vm247, %v527, 0
    %531 = vmatpush.bf16.msra.mxu0 0
    %532 = vmatpush.bf16.msra.mxu0 0
    %533 = vmatpush.bf16.msra.mxu0 0
    %534 = vmatpush.bf16.msra.mxu0 0
    %535 = vmatpush.bf16.msra.mxu0 0
    %536 = vmatpush.bf16.msra.mxu0 0
    %537 = vmatpush.bf16.msra.mxu0 0
    %538 = vmatpush.bf16.msra.mxu0 %v245
    %539 = vmatmul.bf16.gmra.mxu0 %v529
    %v540 = vpop.f32.mrf.mxu0
    %v541 = vadd.f32 0.0, %v540
    %v542 = vpop.f32.mrf.mxu0
    %543 = vdwg.mxu0
    %v545 = vrot.slane %v541, 4
    %v547 = vadd.f32 %v237, %v545
    %v548 = vadd.f32 %v547, %v269
    %v549 = vmul.f32 %v548, 0.5
    %v550 = vtanh.pop %v549
    %v551 = vadd.f32 %v550, 1.0
    %v552 = vmul.f32 %v551, 0.5
    %v553 = vtanh.pop %v548
    %v555 = vrot.slane %v511, 2
    %v557 = vmul.f32 %v552, %v555
    %559 = vrot.lane.b32.xlu0 %v553, 96
    %v560 = vpop.permute.xlu0 %559
    %v562 = vmul.f32 %v552, %v560
    %564 = vrot.lane.b32.xlu0 %v562, 16
    %v565 = vpop.permute.xlu0 %564
    %v567 = vadd.f32 %v557, %v565
    %v568 = vtanh.pop %v567
    %570 = vrot.lane.b32.xlu0 %v568, 32
    %v571 = vpop.permute.xlu0 %570
    %v573 = vmul.f32 %v552, %v571
    %575 = vrot.lane.b32.xlu0 %v573, 80
    %v576 = vpop.permute.xlu0 %575
    %578 = vst.msk [vmem:[#allocation3] sm:$0x30] %vm355, %v576
    %v579 = vpack.c.bf16 %v573, %v573
    %v581 = vrot.slane %v579, 2
    %582 = vrot.lane.b32.xlu0 %v581, 80
    %v583 = vpop.permute.xlu0 %582
    %v585 = vsel %vm247, %v583, 0
    %587 = vmatpush.bf16.msra.mxu0 0
    %588 = vmatpush.bf16.msra.mxu0 0
    %589 = vmatpush.bf16.msra.mxu0 0
    %590 = vmatpush.bf16.msra.mxu0 0
    %591 = vmatpush.bf16.msra.mxu0 0
    %592 = vmatpush.bf16.msra.mxu0 0
    %593 = vmatpush.bf16.msra.mxu0 0
    %594 = vmatpush.bf16.msra.mxu0 %v245
    %595 = vmatmul.bf16.gmra.mxu0 %v585
    %v596 = vpop.f32.mrf.mxu0
    %v597 = vadd.f32 0.0, %v596
    %v598 = vpop.f32.mrf.mxu0
    %599 = vdwg.mxu0
    %v601 = vrot.slane %v597, 6
    %v603 = vadd.f32 %v237, %v601
    %v604 = vadd.f32 %v603, %v269
    %v605 = vmul.f32 %v604, 0.5
    %v606 = vtanh.pop %v605
    %v607 = vadd.f32 %v606, 1.0
    %v608 = vmul.f32 %v607, 0.5
    %v609 = vtanh.pop %v604
    %v611 = vrot.slane %v567, 2
    %v613 = vmul.f32 %v608, %v611
    %615 = vrot.lane.b32.xlu0 %v609, 96
    %v616 = vpop.permute.xlu0 %615
    %v618 = vmul.f32 %v608, %v616
    %620 = vrot.lane.b32.xlu0 %v618, 16
    %v621 = vpop.permute.xlu0 %620
    %v623 = vadd.f32 %v613, %v621
    %v624 = vtanh.pop %v623
    %626 = vrot.lane.b32.xlu0 %v624, 32
    %v627 = vpop.permute.xlu0 %626
    %v629 = vmul.f32 %v608, %v627
    %631 = vrot.lane.b32.xlu0 %v629, 80
    %v632 = vpop.permute.xlu0 %631
    %634 = vst.msk [vmem:[#allocation3] sm:$0xc] %vm412, %v632
    %v635 = vpack.c.bf16 %v629, %v629
    %v637 = vrot.slane %v635, 1
    %638 = vrot.lane.b32.xlu0 %v637, 80
    %v639 = vpop.permute.xlu0 %638
    %v641 = vsel %vm247, %v639, 0
    %643 = vmatpush.bf16.msra.mxu0 0
    %644 = vmatpush.bf16.msra.mxu0 0
    %645 = vmatpush.bf16.msra.mxu0 0
    %646 = vmatpush.bf16.msra.mxu0 0
    %647 = vmatpush.bf16.msra.mxu0 0
    %648 = vmatpush.bf16.msra.mxu0 0
    %649 = vmatpush.bf16.msra.mxu0 0
    %650 = vmatpush.bf16.msra.mxu0 %v245
    %651 = vmatmul.bf16.gmra.mxu0 %v641
    %v652 = vpop.f32.mrf.mxu0
    %v653 = vadd.f32 0.0, %v652
    %v654 = vpop.f32.mrf.mxu0
    %655 = vdwg.mxu0
    %v656 = vadd.f32 %v237, %v653
    %v657 = vadd.f32 %v656, %v269
    %v658 = vmul.f32 %v657, 0.5
    %v659 = vtanh.pop %v658
    %v660 = vadd.f32 %v659, 1.0
    %v661 = vmul.f32 %v660, 0.5
    %v662 = vtanh.pop %v657
    %v664 = vrot.slane %v623, 2
    %v666 = vmul.f32 %v661, %v664
    %668 = vrot.lane.b32.xlu0 %v662, 96
    %v669 = vpop.permute.xlu0 %668
    %v671 = vmul.f32 %v661, %v669
    %673 = vrot.lane.b32.xlu0 %v671, 16
    %v674 = vpop.permute.xlu0 %673
    %v676 = vadd.f32 %v666, %v674
    %v677 = vtanh.pop %v676
    %679 = vrot.lane.b32.xlu0 %v677, 32
    %v680 = vpop.permute.xlu0 %679
    %v682 = vmul.f32 %v661, %v680
    %684 = vrot.lane.b32.xlu0 %v682, 80
    %v685 = vpop.permute.xlu0 %684
    %687 = vst.msk [vmem:[#allocation3] sm:$0x3] %vm466, %v685
    %v690 = vunpack.c.l.b16 %v167
    %v691 = vunpack.c.l.b16 %v168
    %v692 = vpack.c.b16 %v691, %v690
    %694 = vmatpush.bf16.msra.mxu0 0
    %695 = vmatpush.bf16.msra.mxu0 0
    %696 = vmatpush.bf16.msra.mxu0 0
    %697 = vmatpush.bf16.msra.mxu0 0
    %698 = vmatpush.bf16.msra.mxu0 0
    %699 = vmatpush.bf16.msra.mxu0 0
    %700 = vmatpush.bf16.msra.mxu0 0
    %701 = vmatpush.bf16.msra.mxu0 %v692
    %702 = vmatmul.bf16.gmra.mxu0 %v249
    %v703 = vpop.f32.mrf.mxu0
    %v704 = vadd.f32 0.0, %v703
    %v705 = vpop.f32.mrf.mxu0
    %706 = vdwg.mxu0
    %v707 = vadd.f32 %v208, %v704
    %v709 = vperm.slane %v171, 0
    %v711 = vadd.f32 %v707, %v709
    %v712 = vmul.f32 %v711, 0.5
    %v713 = vtanh.pop %v712
    %v714 = vadd.f32 %v713, 1.0
    %v715 = vmul.f32 %v714, 0.5
    %v716 = vtanh.pop %v711
    %v717 = vmul.f32 %v715, 0.0
    %719 = vrot.lane.b32.xlu0 %v716, 96
    %v720 = vpop.permute.xlu0 %719
    %v722 = vmul.f32 %v715, %v720
    %724 = vrot.lane.b32.xlu0 %v722, 16
    %v725 = vpop.permute.xlu0 %724
    %v727 = vadd.f32 %v717, %v725
    %v728 = vtanh.pop %v727
    %730 = vrot.lane.b32.xlu0 %v728, 32
    %v731 = vpop.permute.xlu0 %730
    %v733 = vmul.f32 %v715, %v731
    %735 = vrot.lane.b32.xlu0 %v733, 80
    %v736 = vpop.permute.xlu0 %735
    %738 = vst.msk [vmem:[#allocation2] sm:$0x3] %vm466, %v736
    %v739 = vpack.c.bf16 %v733, %v733
    %741 = vrot.lane.b32.xlu0 %v739, 80
    %v742 = vpop.permute.xlu0 %741
    %v744 = vsel %vm247, %v742, 0
    %746 = vmatpush.bf16.msra.mxu0 0
    %747 = vmatpush.bf16.msra.mxu0 0
    %748 = vmatpush.bf16.msra.mxu0 0
    %749 = vmatpush.bf16.msra.mxu0 0
    %750 = vmatpush.bf16.msra.mxu0 0
    %751 = vmatpush.bf16.msra.mxu0 0
    %752 = vmatpush.bf16.msra.mxu0 0
    %753 = vmatpush.bf16.msra.mxu0 %v692
    %754 = vmatmul.bf16.gmra.mxu0 %v744
    %v755 = vpop.f32.mrf.mxu0
    %v756 = vadd.f32 0.0, %v755
    %v757 = vpop.f32.mrf.mxu0
    %758 = vdwg.mxu0
    %v760 = vrot.slane %v756, 6
    %v762 = vadd.f32 %v208, %v760
    %v763 = vadd.f32 %v762, %v709
    %v764 = vmul.f32 %v763, 0.5
    %v765 = vtanh.pop %v764
    %v766 = vadd.f32 %v765, 1.0
    %v767 = vmul.f32 %v766, 0.5
    %v768 = vtanh.pop %v763
    %v770 = vrot.slane %v727, 6
    %v772 = vmul.f32 %v767, %v770
    %774 = vrot.lane.b32.xlu0 %v768, 96
    %v775 = vpop.permute.xlu0 %774
    %v777 = vmul.f32 %v767, %v775
    %779 = vrot.lane.b32.xlu0 %v777, 16
    %v780 = vpop.permute.xlu0 %779
    %v782 = vadd.f32 %v772, %v780
    %v783 = vtanh.pop %v782
    %785 = vrot.lane.b32.xlu0 %v783, 32
    %v786 = vpop.permute.xlu0 %785
    %v788 = vmul.f32 %v767, %v786
    %790 = vrot.lane.b32.xlu0 %v788, 80
    %v791 = vpop.permute.xlu0 %790
    %793 = vst.msk [vmem:[#allocation2] sm:$0xc] %vm412, %v791
    %v794 = vpack.c.bf16 %v788, %v788
    %v796 = vrot.slane %v794, 1
    %797 = vrot.lane.b32.xlu0 %v796, 80
    %v798 = vpop.permute.xlu0 %797
    %v800 = vsel %vm247, %v798, 0
    %802 = vmatpush.bf16.msra.mxu0 0
    %803 = vmatpush.bf16.msra.mxu0 0
    %804 = vmatpush.bf16.msra.mxu0 0
    %805 = vmatpush.bf16.msra.mxu0 0
    %806 = vmatpush.bf16.msra.mxu0 0
    %807 = vmatpush.bf16.msra.mxu0 0
    %808 = vmatpush.bf16.msra.mxu0 0
    %809 = vmatpush.bf16.msra.mxu0 %v692
    %810 = vmatmul.bf16.gmra.mxu0 %v800
    %v811 = vpop.f32.mrf.mxu0
    %v812 = vadd.f32 0.0, %v811
    %v813 = vpop.f32.mrf.mxu0
    %814 = vdwg.mxu0
    %v816 = vrot.slane %v812, 4
    %v818 = vadd.f32 %v208, %v816
    %v819 = vadd.f32 %v818, %v709
    %v820 = vmul.f32 %v819, 0.5
    %v821 = vtanh.pop %v820
    %v822 = vadd.f32 %v821, 1.0
    %v823 = vmul.f32 %v822, 0.5
    %v824 = vtanh.pop %v819
    %v826 = vrot.slane %v782, 6
    %v828 = vmul.f32 %v823, %v826
    %830 = vrot.lane.b32.xlu0 %v824, 96
    %v831 = vpop.permute.xlu0 %830
    %v833 = vmul.f32 %v823, %v831
    %835 = vrot.lane.b32.xlu0 %v833, 16
    %v836 = vpop.permute.xlu0 %835
    %v838 = vadd.f32 %v828, %v836
    %v839 = vtanh.pop %v838
    %841 = vrot.lane.b32.xlu0 %v839, 32
    %v842 = vpop.permute.xlu0 %841
    %v844 = vmul.f32 %v823, %v842
    %846 = vrot.lane.b32.xlu0 %v844, 80
    %v847 = vpop.permute.xlu0 %846
    %849 = vst.msk [vmem:[#allocation2] sm:$0x30] %vm355, %v847
    %v850 = vpack.c.bf16 %v844, %v844
    %v852 = vrot.slane %v850, 2
    %853 = vrot.lane.b32.xlu0 %v852, 80
    %v854 = vpop.permute.xlu0 %853
    %v856 = vsel %vm247, %v854, 0
    %858 = vmatpush.bf16.msra.mxu0 0
    %859 = vmatpush.bf16.msra.mxu0 0
    %860 = vmatpush.bf16.msra.mxu0 0
    %861 = vmatpush.bf16.msra.mxu0 0
    %862 = vmatpush.bf16.msra.mxu0 0
    %863 = vmatpush.bf16.msra.mxu0 0
    %864 = vmatpush.bf16.msra.mxu0 0
    %865 = vmatpush.bf16.msra.mxu0 %v692
    %866 = vmatmul.bf16.gmra.mxu0 %v856
    %v867 = vpop.f32.mrf.mxu0
    %v868 = vadd.f32 0.0, %v867
    %v869 = vpop.f32.mrf.mxu0
    %870 = vdwg.mxu0
    %v872 = vrot.slane %v868, 2
    %v874 = vadd.f32 %v208, %v872
    %v875 = vadd.f32 %v874, %v709
    %v876 = vmul.f32 %v875, 0.5
    %v877 = vtanh.pop %v876
    %v878 = vadd.f32 %v877, 1.0
    %v879 = vmul.f32 %v878, 0.5
    %v880 = vtanh.pop %v875
    %v882 = vrot.slane %v838, 6
    %v884 = vmul.f32 %v879, %v882
    %886 = vrot.lane.b32.xlu0 %v880, 96
    %v887 = vpop.permute.xlu0 %886
    %v889 = vmul.f32 %v879, %v887
    %891 = vrot.lane.b32.xlu0 %v889, 16
    %v892 = vpop.permute.xlu0 %891
    %v894 = vadd.f32 %v884, %v892
    %v895 = vtanh.pop %v894
    %897 = vrot.lane.b32.xlu0 %v895, 32
    %v898 = vpop.permute.xlu0 %897
    %v900 = vmul.f32 %v879, %v898
    %902 = vrot.lane.b32.xlu0 %v900, 80
    %v903 = vpop.permute.xlu0 %902
    %905 = vst.msk [vmem:[#allocation2] sm:$0xc0] %vm298, %v903
    %v906 = vpack.c.bf16 %v900, %v900
    %v908 = vrot.slane %v906, 3
    %909 = vrot.lane.b32.xlu0 %v908, 80
    %v910 = vpop.permute.xlu0 %909
    %v912 = vsel %vm247, %v910, 0
    %914 = vmatpush.bf16.msra.mxu0 0
    %915 = vmatpush.bf16.msra.mxu0 0
    %916 = vmatpush.bf16.msra.mxu0 0
    %917 = vmatpush.bf16.msra.mxu0 0
    %918 = vmatpush.bf16.msra.mxu0 0
    %919 = vmatpush.bf16.msra.mxu0 0
    %920 = vmatpush.bf16.msra.mxu0 0
    %921 = vmatpush.bf16.msra.mxu0 %v692
    %922 = vmatmul.bf16.gmra.mxu0 %v912
    %v923 = vpop.f32.mrf.mxu0
    %v924 = vadd.f32 0.0, %v923
    %v925 = vpop.f32.mrf.mxu0
    %926 = vdwg.mxu0
    %v927 = vadd.f32 %v210, %v924
    %v928 = vadd.f32 %v927, %v709
    %v929 = vmul.f32 %v928, 0.5
    %v930 = vtanh.pop %v929
    %v931 = vadd.f32 %v930, 1.0
    %v932 = vmul.f32 %v931, 0.5
    %v933 = vtanh.pop %v928
    %v935 = vrot.slane %v894, 6
    %v937 = vmul.f32 %v932, %v935
    %939 = vrot.lane.b32.xlu0 %v933, 96
    %v940 = vpop.permute.xlu0 %939
    %v942 = vmul.f32 %v932, %v940
    %944 = vrot.lane.b32.xlu0 %v942, 16
    %v945 = vpop.permute.xlu0 %944
    %v947 = vadd.f32 %v937, %v945
    %v948 = vtanh.pop %v947
    %950 = vrot.lane.b32.xlu0 %v948, 32
    %v951 = vpop.permute.xlu0 %950
    %v953 = vmul.f32 %v932, %v951
    %955 = vrot.lane.b32.xlu0 %v953, 80
    %v956 = vpop.permute.xlu0 %955
    %958 = vst.msk [vmem:[#allocation2 + $0x8] sm:$0x3] %vm466, %v956
    %v959 = vpack.c.bf16 %v953, %v953
    %961 = vrot.lane.b32.xlu0 %v959, 80
    %v962 = vpop.permute.xlu0 %961
    %v964 = vsel %vm247, %v962, 0
    %966 = vmatpush.bf16.msra.mxu0 0
    %967 = vmatpush.bf16.msra.mxu0 0
    %968 = vmatpush.bf16.msra.mxu0 0
    %969 = vmatpush.bf16.msra.mxu0 0
    %970 = vmatpush.bf16.msra.mxu0 0
    %971 = vmatpush.bf16.msra.mxu0 0
    %972 = vmatpush.bf16.msra.mxu0 0
    %973 = vmatpush.bf16.msra.mxu0 %v692
    %974 = vmatmul.bf16.gmra.mxu0 %v964
    %v975 = vpop.f32.mrf.mxu0
    %v976 = vadd.f32 0.0, %v975
    %v977 = vpop.f32.mrf.mxu0
    %978 = vdwg.mxu0
    %v980 = vrot.slane %v976, 6
    %v982 = vadd.f32 %v210, %v980
    %v983 = vadd.f32 %v982, %v709
    %v984 = vmul.f32 %v983, 0.5
    %v985 = vtanh.pop %v984
    %v986 = vadd.f32 %v985, 1.0
    %v987 = vmul.f32 %v986, 0.5
    %v988 = vtanh.pop %v983
    %v990 = vrot.slane %v947, 6
    %v992 = vmul.f32 %v987, %v990
    %994 = vrot.lane.b32.xlu0 %v988, 96
    %v995 = vpop.permute.xlu0 %994
    %v997 = vmul.f32 %v987, %v995
    %999 = vrot.lane.b32.xlu0 %v997, 16
    %v1000 = vpop.permute.xlu0 %999
    %v1002 = vadd.f32 %v992, %v1000
    %v1003 = vtanh.pop %v1002
    %1005 = vrot.lane.b32.xlu0 %v1003, 32
    %v1006 = vpop.permute.xlu0 %1005
    %v1008 = vmul.f32 %v987, %v1006
    %1010 = vrot.lane.b32.xlu0 %v1008, 80
    %v1011 = vpop.permute.xlu0 %1010
    %1013 = vst.msk [vmem:[#allocation2 + $0x8] sm:$0xc] %vm412, %v1011
    %v1014 = vpack.c.bf16 %v1008, %v1008
    %v1016 = vrot.slane %v1014, 1
    %1017 = vrot.lane.b32.xlu0 %v1016, 80
    %v1018 = vpop.permute.xlu0 %1017
    %v1020 = vsel %vm247, %v1018, 0
    %1022 = vmatpush.bf16.msra.mxu0 0
    %1023 = vmatpush.bf16.msra.mxu0 0
    %1024 = vmatpush.bf16.msra.mxu0 0
    %1025 = vmatpush.bf16.msra.mxu0 0
    %1026 = vmatpush.bf16.msra.mxu0 0
    %1027 = vmatpush.bf16.msra.mxu0 0
    %1028 = vmatpush.bf16.msra.mxu0 0
    %1029 = vmatpush.bf16.msra.mxu0 %v692
    %1030 = vmatmul.bf16.gmra.mxu0 %v1020
    %v1031 = vpop.f32.mrf.mxu0
    %v1032 = vadd.f32 0.0, %v1031
    %v1033 = vpop.f32.mrf.mxu0
    %1034 = vdwg.mxu0
    %v1036 = vrot.slane %v1032, 4
    %v1038 = vadd.f32 %v210, %v1036
    %v1039 = vadd.f32 %v1038, %v709
    %v1040 = vmul.f32 %v1039, 0.5
    %v1041 = vtanh.pop %v1040
    %v1042 = vadd.f32 %v1041, 1.0
    %v1043 = vmul.f32 %v1042, 0.5
    %v1044 = vtanh.pop %v1039
    %v1046 = vrot.slane %v1002, 6
    %v1048 = vmul.f32 %v1043, %v1046
    %1050 = vrot.lane.b32.xlu0 %v1044, 96
    %v1051 = vpop.permute.xlu0 %1050
    %v1053 = vmul.f32 %v1043, %v1051
    %1055 = vrot.lane.b32.xlu0 %v1053, 16
    %v1056 = vpop.permute.xlu0 %1055
    %v1058 = vadd.f32 %v1048, %v1056
    %v1059 = vtanh.pop %v1058
    %1061 = vrot.lane.b32.xlu0 %v1059, 32
    %v1062 = vpop.permute.xlu0 %1061
    %v1064 = vmul.f32 %v1043, %v1062
    %1066 = vrot.lane.b32.xlu0 %v1064, 80
    %v1067 = vpop.permute.xlu0 %1066
    %1069 = vst.msk [vmem:[#allocation2 + $0x8] sm:$0x30] %vm355, %v1067
    %v1070 = vpack.c.bf16 %v1064, %v1064
    %v1072 = vrot.slane %v1070, 2
    %1073 = vrot.lane.b32.xlu0 %v1072, 80
    %v1074 = vpop.permute.xlu0 %1073
    %v1076 = vsel %vm247, %v1074, 0
    %1078 = vmatpush.bf16.msra.mxu0 0
    %1079 = vmatpush.bf16.msra.mxu0 0
    %1080 = vmatpush.bf16.msra.mxu0 0
    %1081 = vmatpush.bf16.msra.mxu0 0
    %1082 = vmatpush.bf16.msra.mxu0 0
    %1083 = vmatpush.bf16.msra.mxu0 0
    %1084 = vmatpush.bf16.msra.mxu0 0
    %1085 = vmatpush.bf16.msra.mxu0 %v692
    %1086 = vmatmul.bf16.gmra.mxu0 %v1076
    %v1087 = vpop.f32.mrf.mxu0
    %v1088 = vadd.f32 0.0, %v1087
    %v1089 = vpop.f32.mrf.mxu0
    %1090 = vdwg.mxu0
    %v1092 = vrot.slane %v1088, 2
    %v1094 = vadd.f32 %v210, %v1092
    %v1095 = vadd.f32 %v1094, %v709
    %v1096 = vmul.f32 %v1095, 0.5
    %v1097 = vtanh.pop %v1096
    %v1098 = vadd.f32 %v1097, 1.0
    %v1099 = vmul.f32 %v1098, 0.5
    %v1100 = vtanh.pop %v1095
    %v1102 = vrot.slane %v1058, 6
    %v1104 = vmul.f32 %v1099, %v1102
    %1106 = vrot.lane.b32.xlu0 %v1100, 96
    %v1107 = vpop.permute.xlu0 %1106
    %v1109 = vmul.f32 %v1099, %v1107
    %1111 = vrot.lane.b32.xlu0 %v1109, 16
    %v1112 = vpop.permute.xlu0 %1111
    %v1114 = vadd.f32 %v1104, %v1112
    %v1115 = vtanh.pop %v1114
    %1117 = vrot.lane.b32.xlu0 %v1115, 32
    %v1118 = vpop.permute.xlu0 %1117
    %v1120 = vmul.f32 %v1099, %v1118
    %1122 = vrot.lane.b32.xlu0 %v1120, 80
    %v1123 = vpop.permute.xlu0 %1122
    %1125 = vst.msk [vmem:[#allocation2 + $0x8] sm:$0xc0] %vm298, %v1123
    %v1126 = vld [vmem:[#allocation2] sm:$0xff]
    %v1127 = vld [vmem:[#allocation2 + $0x8] sm:$0xff]
    %v1128 = vpack.c.bf16 %v1127, %v1126
    %v1129 = vld [vmem:[#allocation13] sm:$0xf]
    %v1130 = vld [vmem:[#allocation13 + $0x4] sm:$0xf]
    %v1131 = vld [vmem:[#allocation3] sm:$0xff]
    %v1132 = vld [vmem:[#allocation3 + $0x8] sm:$0xff]
    %v1133 = vpack.c.bf16 %v1132, %v1131
    %v1134 = vld [vmem:[#allocation15] sm:$0xf]
    %v1135 = vld [vmem:[#allocation15 + $0x4] sm:$0xf]
    %v1138 = vunpack.c.l.b16 %v1134
    %v1139 = vunpack.c.l.b16 %v1135
    %v1140 = vpack.c.b16 %v1139, %v1138
    %v1143 = vsel %vm247, %v1133, 0
    %1145 = vmatpush.bf16.msra.mxu0 0
    %1146 = vmatpush.bf16.msra.mxu0 0
    %1147 = vmatpush.bf16.msra.mxu0 0
    %1148 = vmatpush.bf16.msra.mxu0 0
    %1149 = vmatpush.bf16.msra.mxu0 0
    %1150 = vmatpush.bf16.msra.mxu0 0
    %1151 = vmatpush.bf16.msra.mxu0 0
    %1152 = vmatpush.bf16.msra.mxu0 %v1140
    %1153 = vmatmul.bf16.gmra.mxu0 %v1143
    %v1154 = vpop.f32.mrf.mxu0
    %v1155 = vadd.f32 0.0, %v1154
    %v1156 = vpop.f32.mrf.mxu0
    %v1157 = vadd.f32 0.0, %v1156
    %1158 = vdwg.mxu0
    %v1161 = vunpack.c.l.b16 %v1129
    %v1162 = vunpack.c.l.b16 %v1130
    %v1163 = vpack.c.b16 %v1162, %v1161
    %v1166 = vsel %vm247, %v1128, 0
    %1168 = vmatpush.bf16.msra.mxu0 0
    %1169 = vmatpush.bf16.msra.mxu0 0
    %1170 = vmatpush.bf16.msra.mxu0 0
    %1171 = vmatpush.bf16.msra.mxu0 0
    %1172 = vmatpush.bf16.msra.mxu0 0
    %1173 = vmatpush.bf16.msra.mxu0 0
    %1174 = vmatpush.bf16.msra.mxu0 0
    %1175 = vmatpush.bf16.msra.mxu0 %v1163
    %1176 = vmatmul.bf16.gmra.mxu0 %v1166
    %v1177 = vpop.f32.mrf.mxu0
    %v1178 = vadd.f32 %v1155, %v1177
    %v1179 = vpop.f32.mrf.mxu0
    %v1180 = vadd.f32 %v1157, %v1179
    %1181 = vdwg.mxu0
    %v1182 = vld [vmem:[%s10] sm:$0x1]
    %v1184 = vperm.slane %v1182, 0
    %v1186 = vadd.f32 %v1178, %v1184
    %v1187 = vadd.f32 %v1180, %v1184
    %v1188 = vld [vmem:[#allocation16] sm:$0xf]
    %v1189 = vld [vmem:[#allocation16 + $0x4] sm:$0xf]
    %v1190 = vld [vmem:[#allocation16 + $0x8] sm:$0xf]
    %v1191 = vld [vmem:[#allocation16 + $0xc] sm:$0xf]
    %v1196 = vunpack.c.l.b16 %v1188
    %v1197 = vunpack.c.l.b16 %v1189
    %v1198 = vunpack.c.l.b16 %v1190
    %v1199 = vunpack.c.l.b16 %v1191
    %v1200 = vpack.c.b16 %v1197, %v1196
    %v1201 = vpack.c.b16 %v1199, %v1198
    %vm1204 = vcmask 261120
    %v1205 = vsel %vm1204, 0, 0
    %1207 = vmatpush.bf16.msra.mxu0 0
    %1208 = vmatpush.bf16.msra.mxu0 0
    %1209 = vmatpush.bf16.msra.mxu0 0
    %1210 = vmatpush.bf16.msra.mxu0 0
    %1211 = vmatpush.bf16.msra.mxu0 0
    %1212 = vmatpush.bf16.msra.mxu0 0
    %1213 = vmatpush.bf16.msra.mxu0 %v1201
    %1214 = vmatpush.bf16.msra.mxu0 %v1200
    %1215 = vmatmul.bf16.gmra.mxu0 %v1205
    %v1216 = vpop.f32.mrf.mxu0
    %v1217 = vadd.f32 0.0, %v1216
    %v1218 = vpop.f32.mrf.mxu0
    %1219 = vdwg.mxu0
    %v1220 = vadd.f32 %v1186, %v1217
    %v1221 = vmul.f32 %v1220, 0.5
    %v1222 = vtanh.pop %v1221
    %v1223 = vadd.f32 %v1222, 1.0
    %v1224 = vmul.f32 %v1223, 0.5
    %v1225 = vtanh.pop %v1220
    %v1226 = vmul.f32 %v1224, 0.0
    %1228 = vrot.lane.b32.xlu0 %v1225, 64
    %v1229 = vpop.permute.xlu0 %1228
    %v1231 = vmul.f32 %v1224, %v1229
    %1233 = vrot.lane.b32.xlu0 %v1231, 32
    %v1234 = vpop.permute.xlu0 %1233
    %v1236 = vadd.f32 %v1226, %v1234
    %v1237 = vtanh.pop %v1236
    %1239 = vrot.lane.b32.xlu0 %v1237, 64
    %v1240 = vpop.permute.xlu0 %1239
    %v1242 = vmul.f32 %v1224, %v1240
    %v1243 = vpack.c.bf16 %v1242, %v1242
    %1245 = vrot.lane.b32.xlu0 %v1243, 32
    %v1246 = vpop.permute.xlu0 %1245
    %v1248 = vsel %vm1204, %v1246, 0
    %1250 = vmatpush.bf16.msra.mxu0 0
    %1251 = vmatpush.bf16.msra.mxu0 0
    %1252 = vmatpush.bf16.msra.mxu0 0
    %1253 = vmatpush.bf16.msra.mxu0 0
    %1254 = vmatpush.bf16.msra.mxu0 0
    %1255 = vmatpush.bf16.msra.mxu0 0
    %1256 = vmatpush.bf16.msra.mxu0 %v1201
    %1257 = vmatpush.bf16.msra.mxu0 %v1200
    %1258 = vmatmul.bf16.gmra.mxu0 %v1248
    %v1259 = vpop.f32.mrf.mxu0
    %v1260 = vadd.f32 0.0, %v1259
    %v1261 = vpop.f32.mrf.mxu0
    %1262 = vdwg.mxu0
    %v1264 = vrot.slane %v1260, 6
    %v1266 = vadd.f32 %v1186, %v1264
    %v1267 = vmul.f32 %v1266, 0.5
    %v1268 = vtanh.pop %v1267
    %v1269 = vadd.f32 %v1268, 1.0
    %v1270 = vmul.f32 %v1269, 0.5
    %v1271 = vtanh.pop %v1266
    %v1273 = vrot.slane %v1236, 6
    %v1275 = vmul.f32 %v1270, %v1273
    %1277 = vrot.lane.b32.xlu0 %v1271, 64
    %v1278 = vpop.permute.xlu0 %1277
    %v1280 = vmul.f32 %v1270, %v1278
    %1282 = vrot.lane.b32.xlu0 %v1280, 32
    %v1283 = vpop.permute.xlu0 %1282
    %v1285 = vadd.f32 %v1275, %v1283
    %v1286 = vtanh.pop %v1285
    %1288 = vrot.lane.b32.xlu0 %v1286, 64
    %v1289 = vpop.permute.xlu0 %1288
    %v1291 = vmul.f32 %v1270, %v1289
    %v1292 = vpack.c.bf16 %v1291, %v1291
    %v1294 = vrot.slane %v1292, 1
    %1295 = vrot.lane.b32.xlu0 %v1294, 32
    %v1296 = vpop.permute.xlu0 %1295
    %v1298 = vsel %vm1204, %v1296, 0
    %1300 = vmatpush.bf16.msra.mxu0 0
    %1301 = vmatpush.bf16.msra.mxu0 0
    %1302 = vmatpush.bf16.msra.mxu0 0
    %1303 = vmatpush.bf16.msra.mxu0 0
    %1304 = vmatpush.bf16.msra.mxu0 0
    %1305 = vmatpush.bf16.msra.mxu0 0
    %1306 = vmatpush.bf16.msra.mxu0 %v1201
    %1307 = vmatpush.bf16.msra.mxu0 %v1200
    %1308 = vmatmul.bf16.gmra.mxu0 %v1298
    %v1309 = vpop.f32.mrf.mxu0
    %v1310 = vadd.f32 0.0, %v1309
    %v1311 = vpop.f32.mrf.mxu0
    %1312 = vdwg.mxu0
    %v1314 = vrot.slane %v1310, 4
    %v1316 = vadd.f32 %v1186, %v1314
    %v1317 = vmul.f32 %v1316, 0.5
    %v1318 = vtanh.pop %v1317
    %v1319 = vadd.f32 %v1318, 1.0
    %v1320 = vmul.f32 %v1319, 0.5
    %v1321 = vtanh.pop %v1316
    %v1323 = vrot.slane %v1285, 6
    %v1325 = vmul.f32 %v1320, %v1323
    %1327 = vrot.lane.b32.xlu0 %v1321, 64
    %v1328 = vpop.permute.xlu0 %1327
    %v1330 = vmul.f32 %v1320, %v1328
    %1332 = vrot.lane.b32.xlu0 %v1330, 32
    %v1333 = vpop.permute.xlu0 %1332
    %v1335 = vadd.f32 %v1325, %v1333
    %v1336 = vtanh.pop %v1335
    %1338 = vrot.lane.b32.xlu0 %v1336, 64
    %v1339 = vpop.permute.xlu0 %1338
    %v1341 = vmul.f32 %v1320, %v1339
    %v1342 = vpack.c.bf16 %v1341, %v1341
    %v1344 = vrot.slane %v1342, 2
    %1345 = vrot.lane.b32.xlu0 %v1344, 32
    %v1346 = vpop.permute.xlu0 %1345
    %v1348 = vsel %vm1204, %v1346, 0
    %1350 = vmatpush.bf16.msra.mxu0 0
    %1351 = vmatpush.bf16.msra.mxu0 0
    %1352 = vmatpush.bf16.msra.mxu0 0
    %1353 = vmatpush.bf16.msra.mxu0 0
    %1354 = vmatpush.bf16.msra.mxu0 0
    %1355 = vmatpush.bf16.msra.mxu0 0
    %1356 = vmatpush.bf16.msra.mxu0 %v1201
    %1357 = vmatpush.bf16.msra.mxu0 %v1200
    %1358 = vmatmul.bf16.gmra.mxu0 %v1348
    %v1359 = vpop.f32.mrf.mxu0
    %v1360 = vadd.f32 0.0, %v1359
    %v1361 = vpop.f32.mrf.mxu0
    %1362 = vdwg.mxu0
    %v1364 = vrot.slane %v1360, 2
    %v1366 = vadd.f32 %v1186, %v1364
    %v1367 = vmul.f32 %v1366, 0.5
    %v1368 = vtanh.pop %v1367
    %v1369 = vadd.f32 %v1368, 1.0
    %v1370 = vmul.f32 %v1369, 0.5
    %v1371 = vtanh.pop %v1366
    %v1373 = vrot.slane %v1335, 6
    %v1375 = vmul.f32 %v1370, %v1373
    %1377 = vrot.lane.b32.xlu0 %v1371, 64
    %v1378 = vpop.permute.xlu0 %1377
    %v1380 = vmul.f32 %v1370, %v1378
    %1382 = vrot.lane.b32.xlu0 %v1380, 32
    %v1383 = vpop.permute.xlu0 %1382
    %v1385 = vadd.f32 %v1375, %v1383
    %v1386 = vtanh.pop %v1385
    %1388 = vrot.lane.b32.xlu0 %v1386, 64
    %v1389 = vpop.permute.xlu0 %1388
    %v1391 = vmul.f32 %v1370, %v1389
    %v1392 = vpack.c.bf16 %v1391, %v1391
    %v1394 = vrot.slane %v1392, 3
    %1395 = vrot.lane.b32.xlu0 %v1394, 32
    %v1396 = vpop.permute.xlu0 %1395
    %v1398 = vsel %vm1204, %v1396, 0
    %1400 = vmatpush.bf16.msra.mxu0 0
    %1401 = vmatpush.bf16.msra.mxu0 0
    %1402 = vmatpush.bf16.msra.mxu0 0
    %1403 = vmatpush.bf16.msra.mxu0 0
    %1404 = vmatpush.bf16.msra.mxu0 0
    %1405 = vmatpush.bf16.msra.mxu0 0
    %1406 = vmatpush.bf16.msra.mxu0 %v1201
    %1407 = vmatpush.bf16.msra.mxu0 %v1200
    %1408 = vmatmul.bf16.gmra.mxu0 %v1398
    %v1409 = vpop.f32.mrf.mxu0
    %v1410 = vadd.f32 0.0, %v1409
    %v1411 = vpop.f32.mrf.mxu0
    %1412 = vdwg.mxu0
    %v1413 = vadd.f32 %v1187, %v1410
    %v1414 = vmul.f32 %v1413, 0.5
    %v1415 = vtanh.pop %v1414
    %v1416 = vadd.f32 %v1415, 1.0
    %v1417 = vmul.f32 %v1416, 0.5
    %v1418 = vtanh.pop %v1413
    %v1420 = vrot.slane %v1385, 6
    %v1422 = vmul.f32 %v1417, %v1420
    %1424 = vrot.lane.b32.xlu0 %v1418, 64
    %v1425 = vpop.permute.xlu0 %1424
    %v1427 = vmul.f32 %v1417, %v1425
    %1429 = vrot.lane.b32.xlu0 %v1427, 32
    %v1430 = vpop.permute.xlu0 %1429
    %v1432 = vadd.f32 %v1422, %v1430
    %v1433 = vtanh.pop %v1432
    %1435 = vrot.lane.b32.xlu0 %v1433, 64
    %v1436 = vpop.permute.xlu0 %1435
    %v1438 = vmul.f32 %v1417, %v1436
    %v1439 = vpack.c.bf16 %v1438, %v1438
    %1441 = vrot.lane.b32.xlu0 %v1439, 32
    %v1442 = vpop.permute.xlu0 %1441
    %v1444 = vsel %vm1204, %v1442, 0
    %1446 = vmatpush.bf16.msra.mxu0 0
    %1447 = vmatpush.bf16.msra.mxu0 0
    %1448 = vmatpush.bf16.msra.mxu0 0
    %1449 = vmatpush.bf16.msra.mxu0 0
    %1450 = vmatpush.bf16.msra.mxu0 0
    %1451 = vmatpush.bf16.msra.mxu0 0
    %1452 = vmatpush.bf16.msra.mxu0 %v1201
    %1453 = vmatpush.bf16.msra.mxu0 %v1200
    %1454 = vmatmul.bf16.gmra.mxu0 %v1444
    %v1455 = vpop.f32.mrf.mxu0
    %v1456 = vadd.f32 0.0, %v1455
    %v1457 = vpop.f32.mrf.mxu0
    %1458 = vdwg.mxu0
    %v1460 = vrot.slane %v1456, 6
    %v1462 = vadd.f32 %v1187, %v1460
    %v1463 = vmul.f32 %v1462, 0.5
    %v1464 = vtanh.pop %v1463
    %v1465 = vadd.f32 %v1464, 1.0
    %v1466 = vmul.f32 %v1465, 0.5
    %v1467 = vtanh.pop %v1462
    %v1469 = vrot.slane %v1432, 6
    %v1471 = vmul.f32 %v1466, %v1469
    %1473 = vrot.lane.b32.xlu0 %v1467, 64
    %v1474 = vpop.permute.xlu0 %1473
    %v1476 = vmul.f32 %v1466, %v1474
    %1478 = vrot.lane.b32.xlu0 %v1476, 32
    %v1479 = vpop.permute.xlu0 %1478
    %v1481 = vadd.f32 %v1471, %v1479
    %v1482 = vtanh.pop %v1481
    %1484 = vrot.lane.b32.xlu0 %v1482, 64
    %v1485 = vpop.permute.xlu0 %1484
    %v1487 = vmul.f32 %v1466, %v1485
    %v1488 = vpack.c.bf16 %v1487, %v1487
    %v1490 = vrot.slane %v1488, 1
    %1491 = vrot.lane.b32.xlu0 %v1490, 32
    %v1492 = vpop.permute.xlu0 %1491
    %v1494 = vsel %vm1204, %v1492, 0
    %1496 = vmatpush.bf16.msra.mxu0 0
    %1497 = vmatpush.bf16.msra.mxu0 0
    %1498 = vmatpush.bf16.msra.mxu0 0
    %1499 = vmatpush.bf16.msra.mxu0 0
    %1500 = vmatpush.bf16.msra.mxu0 0
    %1501 = vmatpush.bf16.msra.mxu0 0
    %1502 = vmatpush.bf16.msra.mxu0 %v1201
    %1503 = vmatpush.bf16.msra.mxu0 %v1200
    %1504 = vmatmul.bf16.gmra.mxu0 %v1494
    %v1505 = vpop.f32.mrf.mxu0
    %v1506 = vadd.f32 0.0, %v1505
    %v1507 = vpop.f32.mrf.mxu0
    %1508 = vdwg.mxu0
    %v1510 = vrot.slane %v1506, 4
    %v1512 = vadd.f32 %v1187, %v1510
    %v1513 = vmul.f32 %v1512, 0.5
    %v1514 = vtanh.pop %v1513
    %v1515 = vadd.f32 %v1514, 1.0
    %v1516 = vmul.f32 %v1515, 0.5
    %v1517 = vtanh.pop %v1512
    %v1519 = vrot.slane %v1481, 6
    %v1521 = vmul.f32 %v1516, %v1519
    %1523 = vrot.lane.b32.xlu0 %v1517, 64
    %v1524 = vpop.permute.xlu0 %1523
    %v1526 = vmul.f32 %v1516, %v1524
    %1528 = vrot.lane.b32.xlu0 %v1526, 32
    %v1529 = vpop.permute.xlu0 %1528
    %v1531 = vadd.f32 %v1521, %v1529
    %v1532 = vtanh.pop %v1531
    %1534 = vrot.lane.b32.xlu0 %v1532, 64
    %v1535 = vpop.permute.xlu0 %1534
    %v1537 = vmul.f32 %v1516, %v1535
    %v1538 = vpack.c.bf16 %v1537, %v1537
    %v1540 = vrot.slane %v1538, 2
    %1541 = vrot.lane.b32.xlu0 %v1540, 32
    %v1542 = vpop.permute.xlu0 %1541
    %v1544 = vsel %vm1204, %v1542, 0
    %1546 = vmatpush.bf16.msra.mxu0 0
    %1547 = vmatpush.bf16.msra.mxu0 0
    %1548 = vmatpush.bf16.msra.mxu0 0
    %1549 = vmatpush.bf16.msra.mxu0 0
    %1550 = vmatpush.bf16.msra.mxu0 0
    %1551 = vmatpush.bf16.msra.mxu0 0
    %1552 = vmatpush.bf16.msra.mxu0 %v1201
    %1553 = vmatpush.bf16.msra.mxu0 %v1200
    %1554 = vmatmul.bf16.gmra.mxu0 %v1544
    %v1555 = vpop.f32.mrf.mxu0
    %v1556 = vadd.f32 0.0, %v1555
    %v1557 = vpop.f32.mrf.mxu0
    %1558 = vdwg.mxu0
    %v1560 = vrot.slane %v1556, 2
    %v1562 = vadd.f32 %v1187, %v1560
    %v1563 = vmul.f32 %v1562, 0.5
    %v1564 = vtanh.pop %v1563
    %v1565 = vadd.f32 %v1564, 1.0
    %v1566 = vmul.f32 %v1565, 0.5
    %v1567 = vtanh.pop %v1562
    %v1569 = vrot.slane %v1531, 6
    %v1571 = vmul.f32 %v1566, %v1569
    %1573 = vrot.lane.b32.xlu0 %v1567, 64
    %v1574 = vpop.permute.xlu0 %1573
    %v1576 = vmul.f32 %v1566, %v1574
    %1578 = vrot.lane.b32.xlu0 %v1576, 32
    %v1579 = vpop.permute.xlu0 %1578
    %v1581 = vadd.f32 %v1571, %v1579
    %v1582 = vtanh.pop %v1581
    %1584 = vrot.lane.b32.xlu0 %v1582, 64
    %v1585 = vpop.permute.xlu0 %1584
    %v1587 = vmul.f32 %v1566, %v1585
    %1589 = vrot.lane.b32.xlu0 %v1587, 32
    %v1590 = vpop.permute.xlu0 %1589
    %vm1592 = vcmask 261126
    %1593 = vst.msk [vmem:[#allocation18 - $0x6] sm:$0xc0] %vm1592, %v1590
    // Predicated region
    $region78: #{tpu_custom_call.1} parent=1 // pred_check
      _
    $region79: #{tpu_custom_call.1} parent=1 // pred_check_branch
      %1595 = sbr.rel (0) target = $region81
    $region80: #{tpu_custom_call.1} parent=1 // pred_region
      %1597 = vsyncadd [#allocation6], 0
      %s1599 = sshll.u32 [#allocation18], 4
      %s1600 = int_to_ptr.vmem [resolvable:$true] %s1599
      %s1601 = sshll.u32 %s11, 4
      %s1602 = int_to_ptr.hbm [resolvable:$true] %s1601
      %1604 = dma.vmem_to_hbm [thread:$0]  %s1600, 32, %s1602, [#allocation6]
    $region81: #{tpu_custom_call.1} parent=1 // pred_fallthru
      _
    // Predicated region
    $region82: #{tpu_custom_call.1} parent=1 // pred_check
      _
    $region83: #{tpu_custom_call.1} parent=1 // pred_check_branch
      %1606 = sbr.rel (0) target = $region85
    $region84: #{tpu_custom_call.1} parent=1 // pred_region
      %1608 = dma.done [#allocation6], 32
    $region85: #{tpu_custom_call.1} parent=1 // pred_fallthru
      _
    %1609 = vsyncpa [#allocation5], 1
    %1610 = vsyncpa [#allocation8], 1
    %1611 = vsyncpa [#allocation11], 1
    %1612 = vsyncpa [#allocation14], 1
    %1613 = vsyncpa [#allocation17], 1
    %1614 = vsyncpa [#allocation6], 1

</llo_original>
